<compile_context>
chip_gen: v7x
topology: tpu7x:2x2x1
jax: 0.10.0
libtpu: 0.0.40
codegen_flags: <defaults>
</compile_context>

<pallas_src>
import functools

import numpy as np
import jax
import jax.numpy as jnp
from jax import lax
from jax.experimental import pallas as pl
from jax.experimental.pallas import tpu as pltpu


def _round_up(x, m):
    return -(-x // m) * m


# ----------------------------------------------------------------------------
# Pallas kernel: type-dependent embedding MLP (3 Dense layers, tanh, doubling
# residuals) + the  D_i = G_i^T R_i R_i^T G_i[:, :A]  contraction, per tile of
# TN atoms of one batch element.
# ----------------------------------------------------------------------------
def _feature_kernel(x0_ref, env_a_ref, w0_ref, w1_ref, w2_ref, out_ref, *,
                    n0, n1, T2, KP, A):
    # x0_ref    : (TN*KP, 2*T2)  f32   [s(r)*onehot | onehot] per pair row
    # env_a_ref : (TN, 4, KP)    f32   generalized coords, lane dim = neighbors
    # w0_ref    : (2*T2, n0p)    f32   stacked [W0; b0]        (in_features = 1)
    # w1_ref    : (T2*n0p, n1p)  bf16  stacked per-type [W1; b1-row; 0-rows]
    # w2_ref    : (T2*n1p, n2p)  bf16  stacked per-type [W2; b2-row; 0-rows]
    # out_ref   : (TN, A, n2p)   f32   D_i^T (lane-dense, n2 padded to 128)
    rows = x0_ref.shape[0]
    n0p = w0_ref.shape[1]
    n1p = w1_ref.shape[1]
    n2p = w2_ref.shape[1]
    TN = rows // KP

    x0 = x0_ref[...]                                   # (rows, 2*T2)
    oh = x0[:, T2:]                                    # (rows, T2) one-hot

    # ---- layer 0: z0 = s(r)*W0[t] + b0[t] as ONE stacked matmul (f32, K=2*T2)
    h0 = jnp.tanh(jnp.dot(x0, w0_ref[...],
                          preferred_element_type=jnp.float32))   # (rows, n0p)
    # Inject a constant 1 at lane n0 (that lane of h0 is exactly 0 because the
    # matching w0s column is zero) so the next layer's bias is a weight row.
    lane0 = lax.broadcasted_iota(jnp.int32, (1, n0p), 1)
    h0p = h0 + (lane0 == n0).astype(jnp.float32)

    # ---- per-type one-hot masks at ALIGNED lane offsets, derived once per tile
    m1 = jnp.concatenate(
        [jnp.broadcast_to(oh[:, t:t + 1], (rows, n0p)) for t in range(T2)],
        axis=1)                                                   # (rows, T2*n0p)
    m2 = jnp.concatenate(
        [jnp.broadcast_to(oh[:, t:t + 1], (rows, n1p)) for t in range(T2)],
        axis=1)                                                   # (rows, T2*n1p)

    # ---- layer 1: one stacked masked matmul (bias folded via the 1-lane) ----
    a1 = (jnp.concatenate([h0p] * T2, axis=1) * m1).astype(jnp.bfloat16)
    z1 = jnp.dot(a1, w1_ref[...], preferred_element_type=jnp.float32)  # (rows, n1p)
    pieces = [h0[:, :n0], h0[:, :n0]]
    if n1p > 2 * n0:
        pieces.append(jnp.zeros((rows, n1p - 2 * n0), jnp.float32))
    h1 = jnp.tanh(z1) + jnp.concatenate(pieces, axis=1)            # (rows, n1p)
    lane1 = lax.broadcasted_iota(jnp.int32, (1, n1p), 1)
    h1p = h1 + (lane1 == n1).astype(jnp.float32)

    # ---- layer 2 -------------------------------------------------------------
    a2 = (jnp.concatenate([h1p] * T2, axis=1) * m2).astype(jnp.bfloat16)
    z2 = jnp.dot(a2, w2_ref[...], preferred_element_type=jnp.float32)  # (rows, n2p)
    pieces = [h1[:, :n1], h1[:, :n1]]
    if n2p > 2 * n1:
        pieces.append(jnp.zeros((rows, n2p - 2 * n1), jnp.float32))
    g = jnp.tanh(z2) + jnp.concatenate(pieces, axis=1)             # (rows, n2p)
    # Padded neighbor/atom rows have an all-zero one-hot, so g is exactly 0
    # there; padded lanes (>= n2) are exactly 0 as well.

    # ---- epilogue: D_i^T = (R_i^T G_i)[:, :A]^T @ (R_i^T G_i), per atom -----
    g3 = g.reshape(TN, KP, n2p)                                    # (TN, KP, n2p)
    r3 = env_a_ref[...]                                            # (TN, 4, KP)
    s = lax.dot_general(r3, g3, (((2,), (1,)), ((0,), (0,))),
                        preferred_element_type=jnp.float32)        # (TN, 4, n2p)
    dt = lax.dot_general(s[:, :, :A], s, (((1,), (1,)), ((0,), (0,))),
                         preferred_element_type=jnp.float32)       # (TN, A, n2p)
    # TODO(synk): on v5e/v6e the MRF serializes these 2*TN tiny matmuls; an
    # unrolled VPU multiply-accumulate over KP would keep the MXU free there.
    out_ref[...] = dt


# ----------------------------------------------------------------------------
# Plain-JAX glue (index construction, local environment, padding, reshapes).
# ----------------------------------------------------------------------------
def local_environment(coords):
    # Standard DeepPot-SE generalized coordinates with s(r) = 1/r.
    B, N, _ = coords.shape
    idx = jnp.arange(N)
    nb = jnp.arange(N - 1)
    # Row i lists all j != i in increasing order (== torch masked_select on ~eye).
    nb_idx = nb[None, :] + (nb[None, :] >= idx[:, None]).astype(nb.dtype)   # (N, N-1)
    rij = coords[:, :, None, :] - coords[:, None, :, :]                     # (B, N, N, 3)
    rij = rij[:, idx[:, None], nb_idx, :]                                   # (B, N, N-1, 3)
    dij_inv = 1.0 / jnp.sqrt(jnp.sum(rij * rij, axis=-1))                   # (B, N, N-1)
    loc_env_r = dij_inv
    loc_env_a = jnp.concatenate(
        [dij_inv[..., None], rij * (dij_inv ** 2)[..., None]], axis=-1)     # (B, N, N-1, 4)
    return loc_env_r, loc_env_a, nb_idx


def feature_forward(coords, atom_types, params, n_types, neuron, axis_neuron,
                    *, pair_rows_per_tile=512):
    B, N, _ = coords.shape
    K = N - 1
    KP = _round_up(K, 8)             # neighbor axis padded to a multiple of 8
    T2 = n_types * n_types
    n0, n1, n2 = neuron
    A = axis_neuron

    # Lane-aligned layer widths: per-type offsets in the stacked activations
    # become aligned 32/64-lane moves; lane n0/n1 carries the folded bias.
    n0p = _round_up(n0 + 1, 32)      # 25 -> 32   (T2*n0p = 128)
    n1p = _round_up(n1 + 1, 32)      # 50 -> 64   (T2*n1p = 256)
    n2p = _round_up(n2, 128)         # 100 -> 128 (lane-dense, unmasked stores)

    # Atom tile: target ~512 pair rows per grid step (keeps the MXU fed while
    # per-step VMEM stays far below the v7x 64 MiB budget on all chips).
    TN = max(1, min(N, max(1, pair_rows_per_tile // KP)))
    NP = _round_up(N, TN)
    P = NP * KP

    loc_env_r, loc_env_a, nb_idx = local_environment(coords)

    # TODO(synk): torch.masked_select-based neighbor/type index construction is
    # a data-dependent gather; done here in plain-JAX glue, not inside the kernel.
    neighbor_types = atom_types[nb_idx]                            # (N, K)
    indices = atom_types[:, None] * n_types + neighbor_types       # (N, K)
    indices = jnp.pad(indices, ((0, NP - N), (0, KP - K)), constant_values=-1)
    onehot = jax.nn.one_hot(indices, T2, dtype=jnp.float32)        # (NP, KP, T2); padded rows all-zero

    # Layer-0 LHS [s(r)*onehot | onehot]: one lane-packed f32 stream of width 2*T2.
    env_r = jnp.pad(loc_env_r, ((0, 0), (0, NP - N), (0, KP - K)))           # (B, NP, KP)
    x0 = jnp.concatenate(
        [env_r[..., None] * onehot[None],
         jnp.broadcast_to(onehot[None], (B, NP, KP, T2))], axis=-1)
    x0 = x0.reshape(B, P, 2 * T2).astype(jnp.float32)                        # (B, P, 2*T2)

    # Generalized coordinates with the (long) neighbor axis as the lane dim.
    env_a = jnp.transpose(loc_env_a, (0, 1, 3, 2))                           # (B, N, 4, K)
    env_a = jnp.pad(env_a, ((0, 0), (0, NP - N), (0, 0), (0, KP - K)))
    env_a = env_a.astype(jnp.float32)                                        # (B, NP, 4, KP)

    # Stack per-type weights, fold the biases as extra rows addressed by the
    # injected 1-lane, and zero-pad to the aligned widths (math unchanged).
    w0, b0, w1, b1, w2, b2 = params
    w0s = jnp.zeros((2 * T2, n0p), jnp.float32)
    w0s = w0s.at[:T2, :n0].set(w0).at[T2:, :n0].set(b0)                      # (2*T2, n0p)

    w1s = jnp.zeros((T2, n0p, n1p), jnp.float32)
    w1s = w1s.at[:, :n0, :n1].set(w1).at[:, n0, :n1].set(b1)
    w1s = w1s.reshape(T2 * n0p, n1p).astype(jnp.bfloat16)                    # (128, n1p)

    w2s = jnp.zeros((T2, n1p, n2p), jnp.float32)
    w2s = w2s.at[:, :n1, :n2].set(w2).at[:, n1, :n2].set(b2)
    w2s = w2s.reshape(T2 * n1p, n2p).astype(jnp.bfloat16)                    # (256, n2p)

    kernel = functools.partial(_feature_kernel, n0=n0, n1=n1, T2=T2, KP=KP, A=A)

    out = pl.pallas_call(
        kernel,
        out_shape=jax.ShapeDtypeStruct((B, NP, A, n2p), jnp.float32),
        grid_spec=pltpu.PrefetchScalarGridSpec(
            num_scalar_prefetch=0,
            grid=(B, NP // TN),
            in_specs=[
                pl.BlockSpec((pl.Squeezed(), TN * KP, 2 * T2),
                             lambda b, i: (b, i, 0)),                        # x0
                pl.BlockSpec((pl.Squeezed(), TN, 4, KP),
                             lambda b, i: (b, i, 0, 0)),                     # env_a
                # Grid-invariant weights (tiny; constant index map).
                pl.BlockSpec((2 * T2, n0p), lambda b, i: (0, 0)),            # [W0;b0]
                pl.BlockSpec((T2 * n0p, n1p), lambda b, i: (0, 0)),          # [W1;b1]
                pl.BlockSpec((T2 * n1p, n2p), lambda b, i: (0, 0)),          # [W2;b2]
            ],
            out_specs=pl.BlockSpec((pl.Squeezed(), TN, A, n2p),
                                   lambda b, i: (b, i, 0, 0)),
        ),
        compiler_params=pltpu.CompilerParams(
            dimension_semantics=("parallel", "arbitrary"),
            vmem_limit_bytes=32 * 1024 * 1024),
    )(x0, env_a, w0s, w1s, w2s)

    # (B, NP, A, n2p) -> slice padding -> (B, N, n2, A) -> (B, N, n2*A),
    # identical to torch's transpose + .view().
    out = out[:, :N, :, :n2]
    return jnp.transpose(out, (0, 1, 3, 2)).reshape(B, N, n2 * A)


# ----------------------------------------------------------------------------
# Pure-JAX f32 reference (mirrors the PyTorch forward) for a correctness check.
# ----------------------------------------------------------------------------
def feature_reference(coords, atom_types, params, n_types, neuron, axis_neuron):
    B, N, _ = coords.shape
    A = axis_neuron
    w0, b0, w1, b1, w2, b2 = params
    loc_env_r, loc_env_a, nb_idx = local_environment(coords)
    neighbor_types = atom_types[nb_idx]
    indices = (atom_types[:, None] * n_types + neighbor_types).reshape(-1)

    x = loc_env_r.reshape(B, -1, 1)
    h0 = jnp.tanh(x * w0[indices][None] + b0[indices][None])
    h1 = jnp.tanh(jnp.einsum('bpi,pio->bpo', h0, w1[indices]) + b1[indices][None]) \
        + jnp.concatenate([h0, h0], -1)
    g = jnp.tanh(jnp.einsum('bpi,pio->bpo', h1, w2[indices]) + b2[indices][None]) \
        + jnp.concatenate([h1, h1], -1)

    G = g.reshape(B, N, N - 1, -1)
    R = loc_env_a
    s = jnp.einsum('bnka,bnkm->bnam', R, G[..., :A])
    t = jnp.einsum('bnka,bnam->bnkm', R, s)
    d = jnp.einsum('bnkm,bnka->bnma', G, t)
    return d.reshape(B, N, -1)


if __name__ == "__main__":
    n_types = 2
    neuron = (25, 50, 100)
    axis_neuron = 4
    B, N = 2, 8
    T2 = n_types * n_types
    n0, n1, n2 = neuron

    key = jax.random.PRNGKey(0)
    k_c, k0, k1, k2, k3, k4, k5 = jax.random.split(key, 7)

    # Atoms near cube corners (well separated) + small jitter; deterministic types.
    base = jnp.array([[i, j, l] for i in (0.0, 2.0) for j in (0.0, 2.0) for l in (0.0, 2.0)],
                     dtype=jnp.float32)                                   # (8, 3)
    coords = base[None, :, :] + 0.1 * jax.random.normal(k_c, (B, N, 3), jnp.float32)
    atom_types = jnp.array([0, 1, 0, 1, 1, 0, 1, 0], dtype=jnp.int32)

    params = (
        0.5 * jax.random.normal(k0, (T2, n0), jnp.float32),      # W0 (in_features=1)
        0.1 * jax.random.normal(k1, (T2, n0), jnp.float32),      # b0
        0.2 * jax.random.normal(k2, (T2, n0, n1), jnp.float32),  # W1
        0.1 * jax.random.normal(k3, (T2, n1), jnp.float32),      # b1
        0.2 * jax.random.normal(k4, (T2, n1, n2), jnp.float32),  # W2
        0.1 * jax.random.normal(k5, (T2, n2), jnp.float32),      # b2
    )

    out = feature_forward(coords, atom_types, params, n_types, neuron, axis_neuron)
    out = jax.block_until_ready(out)
    assert out.shape == (B, N, n2 * axis_neuron)

    ref = feature_reference(coords, atom_types, params, n_types, neuron, axis_neuron)
    out_np, ref_np = np.asarray(out), np.asarray(ref)
    # Normalized max-error check: the kernel uses bf16 MXU operands (f32
    # accumulation) for the two stacked embedding matmuls, so compare with a
    # 2% normalized tolerance against the f32 reference.
    err = np.max(np.abs(out_np - ref_np)) / (np.max(np.abs(ref_np)) + 1e-12)
    if not np.isfinite(err) or err > 2e-2:
        raise AssertionError(f"Pallas output does not match JAX reference (err={err})")

    print("KERNEL_OK")
</pallas_src>

<mosaic_0001>
module attributes {stable_mosaic.version = 11 : i64} {
  func.func @_feature_kernel(%arg0: i32, %arg1: i32, %arg2: memref<1x64x8xf32, #tpu.memory_space<vmem>>, %arg3: memref<1x8x4x8xf32, #tpu.memory_space<vmem>>, %arg4: memref<8x32xf32, #tpu.memory_space<vmem>>, %arg5: memref<128x64xbf16, #tpu.memory_space<vmem>>, %arg6: memref<256x128xbf16, #tpu.memory_space<vmem>>, %arg7: memref<1x8x4x128xf32, #tpu.memory_space<vmem>>) attributes {dimension_semantics = [#tpu.dimension_semantics<parallel>, #tpu.dimension_semantics<arbitrary>], iteration_bounds = array<i64: 2, 1>, scalar_prefetch = 0 : i64, scratch_operands = 0 : i64, tpu.core_type = #tpu.core_type<tc>, window_params = [{transform_indices = @transform_0, window_bounds = array<i64: 1, 64, 8>}, {transform_indices = @transform_1, window_bounds = array<i64: 1, 8, 4, 8>}, {pipeline_mode = #tpu.pipeline_mode<synchronous>, transform_indices = @transform_2, window_bounds = array<i64: 8, 32>}, {pipeline_mode = #tpu.pipeline_mode<synchronous>, transform_indices = @transform_3, window_bounds = array<i64: 128, 64>}, {pipeline_mode = #tpu.pipeline_mode<synchronous>, transform_indices = @transform_4, window_bounds = array<i64: 256, 128>}, {transform_indices = @transform_5, window_bounds = array<i64: 1, 8, 4, 128>}]} {
    %c0 = arith.constant 0 : index
    %c0_0 = arith.constant 0 : index
    %c0_1 = arith.constant 0 : index
    %0 = vector.load %arg2[%c0, %c0_0, %c0_1] : memref<1x64x8xf32, #tpu.memory_space<vmem>>, vector<1x64x8xf32>
    %1 = vector.shape_cast %0 : vector<1x64x8xf32> to vector<64x8xf32>
    %2 = vector.extract_strided_slice %1 {offsets = [0, 4], sizes = [64, 4], strides = [1, 1]} : vector<64x8xf32> to vector<64x4xf32>
    %c0_2 = arith.constant 0 : index
    %c0_3 = arith.constant 0 : index
    %3 = vector.load %arg4[%c0_2, %c0_3] : memref<8x32xf32, #tpu.memory_space<vmem>>, vector<8x32xf32>
    %cst = arith.constant dense<0.000000e+00> : vector<64x32xf32>
    %4 = tpu.matmul %1, %3, %cst {dimension_numbers = #tpu.dot_dimension_numbers<[1], [0], [0], [1], [0, 0, 1, 1], [], []>} : vector<64x8xf32>, vector<8x32xf32>, vector<64x32xf32> -> vector<64x32xf32>
    %5 = math.tanh %4 : vector<64x32xf32>
    %6 = tpu.iota {dimensions = array<i32: 1>} : vector<1x32xi32>
    %c25_i32 = arith.constant 25 : i32
    %7 = vector.broadcast %c25_i32 : i32 to vector<1x32xi32>
    %8 = arith.cmpi eq, %6, %7 : vector<1x32xi32>
    %9 = arith.extui %8 : vector<1x32xi1> to vector<1x32xi32>
    %10 = arith.sitofp %9 : vector<1x32xi32> to vector<1x32xf32>
    %11 = vector.broadcast %10 : vector<1x32xf32> to vector<64x32xf32>
    %12 = arith.addf %5, %11 : vector<64x32xf32>
    %13 = vector.extract_strided_slice %2 {offsets = [0, 0], sizes = [64, 1], strides = [1, 1]} : vector<64x4xf32> to vector<64x1xf32>
    %14 = vector.shape_cast %13 : vector<64x1xf32> to vector<64x1xf32>
    %15 = vector.broadcast %14 : vector<64x1xf32> to vector<64x32xf32>
    %16 = vector.extract_strided_slice %2 {offsets = [0, 1], sizes = [64, 1], strides = [1, 1]} : vector<64x4xf32> to vector<64x1xf32>
    %17 = vector.shape_cast %16 : vector<64x1xf32> to vector<64x1xf32>
    %18 = vector.broadcast %17 : vector<64x1xf32> to vector<64x32xf32>
    %19 = vector.extract_strided_slice %2 {offsets = [0, 2], sizes = [64, 1], strides = [1, 1]} : vector<64x4xf32> to vector<64x1xf32>
    %20 = vector.shape_cast %19 : vector<64x1xf32> to vector<64x1xf32>
    %21 = vector.broadcast %20 : vector<64x1xf32> to vector<64x32xf32>
    %22 = vector.extract_strided_slice %2 {offsets = [0, 3], sizes = [64, 1], strides = [1, 1]} : vector<64x4xf32> to vector<64x1xf32>
    %23 = vector.shape_cast %22 : vector<64x1xf32> to vector<64x1xf32>
    %24 = vector.broadcast %23 : vector<64x1xf32> to vector<64x32xf32>
    %25 = tpu.concatenate %15, %18, %21, %24 in 1 : vector<64x32xf32>, vector<64x32xf32>, vector<64x32xf32>, vector<64x32xf32> -> vector<64x128xf32>
    %26 = vector.extract_strided_slice %2 {offsets = [0, 0], sizes = [64, 1], strides = [1, 1]} : vector<64x4xf32> to vector<64x1xf32>
    %27 = vector.shape_cast %26 : vector<64x1xf32> to vector<64x1xf32>
    %28 = vector.broadcast %27 : vector<64x1xf32> to vector<64x64xf32>
    %29 = vector.extract_strided_slice %2 {offsets = [0, 1], sizes = [64, 1], strides = [1, 1]} : vector<64x4xf32> to vector<64x1xf32>
    %30 = vector.shape_cast %29 : vector<64x1xf32> to vector<64x1xf32>
    %31 = vector.broadcast %30 : vector<64x1xf32> to vector<64x64xf32>
    %32 = vector.extract_strided_slice %2 {offsets = [0, 2], sizes = [64, 1], strides = [1, 1]} : vector<64x4xf32> to vector<64x1xf32>
    %33 = vector.shape_cast %32 : vector<64x1xf32> to vector<64x1xf32>
    %34 = vector.broadcast %33 : vector<64x1xf32> to vector<64x64xf32>
    %35 = vector.extract_strided_slice %2 {offsets = [0, 3], sizes = [64, 1], strides = [1, 1]} : vector<64x4xf32> to vector<64x1xf32>
    %36 = vector.shape_cast %35 : vector<64x1xf32> to vector<64x1xf32>
    %37 = vector.broadcast %36 : vector<64x1xf32> to vector<64x64xf32>
    %38 = tpu.concatenate %28, %31, %34, %37 in 1 : vector<64x64xf32>, vector<64x64xf32>, vector<64x64xf32>, vector<64x64xf32> -> vector<64x256xf32>
    %39 = tpu.concatenate %12, %12, %12, %12 in 1 : vector<64x32xf32>, vector<64x32xf32>, vector<64x32xf32>, vector<64x32xf32> -> vector<64x128xf32>
    %40 = arith.mulf %39, %25 : vector<64x128xf32>
    %41 = arith.truncf %40 : vector<64x128xf32> to vector<64x128xbf16>
    %c0_4 = arith.constant 0 : index
    %c0_5 = arith.constant 0 : index
    %42 = vector.load %arg5[%c0_4, %c0_5] : memref<128x64xbf16, #tpu.memory_space<vmem>>, vector<128x64xbf16>
    %cst_6 = arith.constant dense<0.000000e+00> : vector<64x64xf32>
    %43 = tpu.matmul %41, %42, %cst_6 {dimension_numbers = #tpu.dot_dimension_numbers<[1], [0], [0], [1], [0, 0, 1, 1], [], []>} : vector<64x128xbf16>, vector<128x64xbf16>, vector<64x64xf32> -> vector<64x64xf32>
    %44 = vector.extract_strided_slice %5 {offsets = [0, 0], sizes = [64, 25], strides = [1, 1]} : vector<64x32xf32> to vector<64x25xf32>
    %45 = vector.extract_strided_slice %5 {offsets = [0, 0], sizes = [64, 25], strides = [1, 1]} : vector<64x32xf32> to vector<64x25xf32>
    %cst_7 = arith.constant 0.000000e+00 : f32
    %46 = vector.broadcast %cst_7 : f32 to vector<64x14xf32>
    %47 = math.tanh %43 : vector<64x64xf32>
    %48 = tpu.concatenate %44, %45, %46 in 1 : vector<64x25xf32>, vector<64x25xf32>, vector<64x14xf32> -> vector<64x64xf32>
    %49 = arith.addf %47, %48 : vector<64x64xf32>
    %50 = tpu.iota {dimensions = array<i32: 1>} : vector<1x64xi32>
    %c50_i32 = arith.constant 50 : i32
    %51 = vector.broadcast %c50_i32 : i32 to vector<1x64xi32>
    %52 = arith.cmpi eq, %50, %51 : vector<1x64xi32>
    %53 = arith.extui %52 : vector<1x64xi1> to vector<1x64xi32>
    %54 = arith.sitofp %53 : vector<1x64xi32> to vector<1x64xf32>
    %55 = vector.broadcast %54 : vector<1x64xf32> to vector<64x64xf32>
    %56 = arith.addf %49, %55 : vector<64x64xf32>
    %57 = tpu.concatenate %56, %56, %56, %56 in 1 : vector<64x64xf32>, vector<64x64xf32>, vector<64x64xf32>, vector<64x64xf32> -> vector<64x256xf32>
    %58 = arith.mulf %57, %38 : vector<64x256xf32>
    %59 = arith.truncf %58 : vector<64x256xf32> to vector<64x256xbf16>
    %c0_8 = arith.constant 0 : index
    %c0_9 = arith.constant 0 : index
    %60 = vector.load %arg6[%c0_8, %c0_9] : memref<256x128xbf16, #tpu.memory_space<vmem>>, vector<256x128xbf16>
    %cst_10 = arith.constant dense<0.000000e+00> : vector<64x128xf32>
    %61 = tpu.matmul %59, %60, %cst_10 {dimension_numbers = #tpu.dot_dimension_numbers<[1], [0], [0], [1], [0, 0, 1, 1], [], []>} : vector<64x256xbf16>, vector<256x128xbf16>, vector<64x128xf32> -> vector<64x128xf32>
    %62 = vector.extract_strided_slice %49 {offsets = [0, 0], sizes = [64, 50], strides = [1, 1]} : vector<64x64xf32> to vector<64x50xf32>
    %63 = vector.extract_strided_slice %49 {offsets = [0, 0], sizes = [64, 50], strides = [1, 1]} : vector<64x64xf32> to vector<64x50xf32>
    %cst_11 = arith.constant 0.000000e+00 : f32
    %64 = vector.broadcast %cst_11 : f32 to vector<64x28xf32>
    %65 = math.tanh %61 : vector<64x128xf32>
    %66 = tpu.concatenate %62, %63, %64 in 1 : vector<64x50xf32>, vector<64x50xf32>, vector<64x28xf32> -> vector<64x128xf32>
    %67 = arith.addf %65, %66 : vector<64x128xf32>
    %68 = vector.shape_cast %67 : vector<64x128xf32> to vector<8x8x128xf32>
    %c0_12 = arith.constant 0 : index
    %c0_13 = arith.constant 0 : index
    %c0_14 = arith.constant 0 : index
    %c0_15 = arith.constant 0 : index
    %69 = vector.load %arg3[%c0_12, %c0_13, %c0_14, %c0_15] : memref<1x8x4x8xf32, #tpu.memory_space<vmem>>, vector<1x8x4x8xf32>
    %70 = vector.shape_cast %69 : vector<1x8x4x8xf32> to vector<8x4x8xf32>
    %cst_16 = arith.constant dense<0.000000e+00> : vector<8x4x128xf32>
    %71 = tpu.matmul %70, %68, %cst_16 {dimension_numbers = #tpu.dot_dimension_numbers<[2], [1], [1], [2], [0, 0, 0, 1, 1, 2], [0], [0]>} : vector<8x4x8xf32>, vector<8x8x128xf32>, vector<8x4x128xf32> -> vector<8x4x128xf32>
    %72 = vector.extract_strided_slice %71 {offsets = [0, 0, 0], sizes = [8, 4, 4], strides = [1, 1, 1]} : vector<8x4x128xf32> to vector<8x4x4xf32>
    %cst_17 = arith.constant dense<0.000000e+00> : vector<8x4x128xf32>
    %73 = tpu.matmul %72, %71, %cst_17 {dimension_numbers = #tpu.dot_dimension_numbers<[1], [1], [2], [2], [0, 0, 0, 2, 1, 2], [0], [0]>} : vector<8x4x4xf32>, vector<8x4x128xf32>, vector<8x4x128xf32> -> vector<8x4x128xf32>
    %c0_18 = arith.constant 0 : index
    %c0_19 = arith.constant 0 : index
    %c0_20 = arith.constant 0 : index
    %c0_21 = arith.constant 0 : index
    %74 = vector.load %arg7[%c0_18, %c0_19, %c0_20, %c0_21] : memref<1x8x4x128xf32, #tpu.memory_space<vmem>>, vector<1x8x4x128xf32>
    %75 = vector.shape_cast %74 : vector<1x8x4x128xf32> to vector<8x4x128xf32>
    %76 = vector.shape_cast %73 : vector<8x4x128xf32> to vector<1x8x4x128xf32>
    tpu.vector_store %arg7[%c0_18, %c0_19, %c0_20, %c0_21], %76 {strides = array<i32>} : memref<1x8x4x128xf32, #tpu.memory_space<vmem>>, vector<1x8x4x128xf32>,
    return
  }
  func.func @transform_0(%arg0: i32, %arg1: i32) -> (i32, i32, i32) {
    %c0_i32 = arith.constant 0 : i32
    %c0_i32_0 = arith.constant 0 : i32
    return %arg0, %arg1, %c0_i32 : i32, i32, i32
  }
  func.func @transform_1(%arg0: i32, %arg1: i32) -> (i32, i32, i32, i32) {
    %c0_i32 = arith.constant 0 : i32
    %c0_i32_0 = arith.constant 0 : i32
    %c0_i32_1 = arith.constant 0 : i32
    return %arg0, %arg1, %c0_i32, %c0_i32_0 : i32, i32, i32, i32
  }
  func.func @transform_2(%arg0: i32, %arg1: i32) -> (i32, i32) {
    %c0_i32 = arith.constant 0 : i32
    %c0_i32_0 = arith.constant 0 : i32
    %c0_i32_1 = arith.constant 0 : i32
    return %c0_i32, %c0_i32_0 : i32, i32
  }
  func.func @transform_3(%arg0: i32, %arg1: i32) -> (i32, i32) {
    %c0_i32 = arith.constant 0 : i32
    %c0_i32_0 = arith.constant 0 : i32
    %c0_i32_1 = arith.constant 0 : i32
    return %c0_i32, %c0_i32_0 : i32, i32
  }
  func.func @transform_4(%arg0: i32, %arg1: i32) -> (i32, i32) {
    %c0_i32 = arith.constant 0 : i32
    %c0_i32_0 = arith.constant 0 : i32
    %c0_i32_1 = arith.constant 0 : i32
    return %c0_i32, %c0_i32_0 : i32, i32
  }
  func.func @transform_5(%arg0: i32, %arg1: i32) -> (i32, i32, i32, i32) {
    %c0_i32 = arith.constant 0 : i32
    %c0_i32_0 = arith.constant 0 : i32
    %c0_i32_1 = arith.constant 0 : i32
    return %arg0, %arg1, %c0_i32, %c0_i32_0 : i32, i32, i32, i32
  }
}

</mosaic_0001>

<llo_original>
// kernel: tpu_custom_call.1
$region0: #{tpu_custom_call.1}
  #allocation0 [shape = 'u32[]', space=smem, size = 0x4, offset = 0x4, fixed_abs, tag = 'smem constant byte address 0x4 - core index']
  #allocation1 [shape = 'u32[144,128]{1,0:T(1,128)}', space=vmem, size = 0x12000, scoped, tag = 'internal scratch']
  %s0 = inlined_call_operand.vmem [shape: f32[2,64,8], index: 0, kind: input, shape index: {}]
  %s1 = inlined_call_operand.vmem [shape: f32[2,8,4,8], index: 1, kind: input, shape index: {}]
  %s2 = inlined_call_operand.vmem [shape: f32[8,32], index: 2, kind: input, shape index: {}]
  %s3 = inlined_call_operand.vmem [shape: bf16[128,64], index: 3, kind: input, shape index: {}]
  %s4 = inlined_call_operand.vmem [shape: bf16[256,128], index: 4, kind: input, shape index: {}]
  %s5 = inlined_call_operand.hbm [shape: f32[2,8,4,128], index: 5, kind: output, shape index: {}]
  %s6 = sld [smem:[#allocation0]]
  $region53: #{tpu_custom_call.1} parent=0
    _
  %s8 = ssub.s32 1, %s6
  %s9 = scalar_select 0, %s8, %s6
  $region1: #{tpu_custom_call.1} parent=0
    #allocation2 [shape = 'u8[32768]{0}', space=vmem, size = 0x8000, scoped, tag = 'output window, operand 0']
    #allocation3 [shape = 's32[2]{0}', space=sflag, size = 0x8, scoped, tag = 'scoped memory for tpu_custom_call.1']
    %10 = vsyncpa [#allocation3], 0
    %s11 = scalar_lea.sflag [#allocation3], 1
    %12 = vsyncpa %s11, 0
    loop: start=0, step=1, limit=4
    $region2: #{tpu_custom_call.1} parent=1 // loop_pre_header
      _
    $region3: #{tpu_custom_call.1} parent=1 // loop_header
      %s14 = sphi 0, %s18
      %p15 = scmp.ge.s32.totalorder %s14, 4
      %s21 = sphi 0, %s33
      %s22 = sphi 0, %s29
      %s23 = sphi 0, %s21
      %s24 = sphi 0, %s22
      %s25 = sphi 0, %s23
      %s26 = sphi 0, %s24
      %s38 = sphi 0, %s40
      %s41 = sphi 0, %s38
      %s42 = sphi 0, %s41
      %s58 = sphi 0, %s42
      %s66 = sphi 0, %s68
      %s69 = sphi 0, %s66
      %s70 = sphi 0, %s69
      %s86 = sphi 0, %s70
      %s90 = sphi 0, %s90
      %s92 = sphi 0, %s90
      %s93 = sphi 0, %s92
      %s107 = sphi 0, %s93
      %s111 = sphi 0, %s111
      %s113 = sphi 0, %s111
      %s114 = sphi 0, %s113
      %s128 = sphi 0, %s114
      %s132 = sphi 0, %s132
      %s134 = sphi 0, %s132
      %s135 = sphi 0, %s134
      %s149 = sphi 0, %s135
      %s157 = sphi 0, %s159
      %s160 = sphi 0, %s157
      %s161 = sphi 0, %s160
      %s177 = sphi 0, %s161
    $region4: #{tpu_custom_call.1} parent=1 // loop_header_branch
      %17 = sbr.rel (%p15) target = $region8
    $region5: #{tpu_custom_call.1} parent=1 // loop_body
      %s19 = ssub.s32 %s14, 1
      %s20 = ssub.s32 %s14, 2
      %s27 = sadd.s32 1, %s22
      %p28 = scmp.ge.s32.totalorder %s27, 1
      %s29 = scalar_select %p28, 0, %s27
      %s30 = sadd.s32 1, %s21
      %s31 = scalar_select %p28, %s30, %s21
      %p32 = scmp.ge.s32.totalorder %s31, 2
      %s33 = scalar_select %p32, 0, %s31
      %s34 = ssub.s32 %s21, %s33
      %s35 = ssub.s32 %s22, %s29
      %s36 = sor.u32 %s34, %s35
      %p37 = scmp.eq.s32.totalorder %s36, 0
      %s39 = sadd.s32 %s38, 1
      %s40 = scalar_select %p37, %s38, %s39
      %p43 = pneg %p37
      %p44 = scmp.eq.s32.totalorder %s14, 1
      %p45 = por %p43, %p44
      %p46 = scmp.ne.s32.totalorder %s38, %s41
      %p47 = scmp.eq.s32.totalorder %s14, 0
      %p48 = por %p46, %p47
      %p49 = scmp.ne.s32.totalorder %s38, %s41
      %p50 = scmp.eq.s32.totalorder %s19, 1
      %p51 = por %p49, %p50
      %p52 = scmp.ne.s32.totalorder %s41, %s42
      %p53 = scmp.eq.s32.totalorder %s19, 0
      %p54 = por %p52, %p53
      %p55 = scmp.ne.s32.totalorder %s41, %s42
      %p56 = scmp.eq.s32.totalorder %s20, 1
      %p57 = por %p55, %p56
      %p59 = scmp.ne.s32.totalorder %s42, %s58
      %p60 = scmp.eq.s32.totalorder %s20, 0
      %p61 = por %p59, %p60
      %s62 = ssub.s32 %s21, %s33
      %s63 = ssub.s32 %s22, %s29
      %s64 = sor.u32 %s62, %s63
      %p65 = scmp.eq.s32.totalorder %s64, 0
      %s67 = sadd.s32 %s66, 1
      %s68 = scalar_select %p65, %s66, %s67
      %p71 = pneg %p65
      %p72 = scmp.eq.s32.totalorder %s14, 1
      %p73 = por %p71, %p72
      %p74 = scmp.ne.s32.totalorder %s66, %s69
      %p75 = scmp.eq.s32.totalorder %s14, 0
      %p76 = por %p74, %p75
      %p77 = scmp.ne.s32.totalorder %s66, %s69
      %p78 = scmp.eq.s32.totalorder %s19, 1
      %p79 = por %p77, %p78
      %p80 = scmp.ne.s32.totalorder %s69, %s70
      %p81 = scmp.eq.s32.totalorder %s19, 0
      %p82 = por %p80, %p81
      %p83 = scmp.ne.s32.totalorder %s69, %s70
      %p84 = scmp.eq.s32.totalorder %s20, 1
      %p85 = por %p83, %p84
      %p87 = scmp.ne.s32.totalorder %s70, %s86
      %p88 = scmp.eq.s32.totalorder %s20, 0
      %p89 = por %p87, %p88
      %s91 = sadd.s32 %s90, 1
      %p94 = scmp.eq.s32.totalorder %s14, 1
      %p95 = scmp.ne.s32.totalorder %s90, %s92
      %p96 = scmp.eq.s32.totalorder %s14, 0
      %p97 = por %p95, %p96
      %p98 = scmp.ne.s32.totalorder %s90, %s92
      %p99 = scmp.eq.s32.totalorder %s19, 1
      %p100 = por %p98, %p99
      %p101 = scmp.ne.s32.totalorder %s92, %s93
      %p102 = scmp.eq.s32.totalorder %s19, 0
      %p103 = por %p101, %p102
      %p104 = scmp.ne.s32.totalorder %s92, %s93
      %p105 = scmp.eq.s32.totalorder %s20, 1
      %p106 = por %p104, %p105
      %p108 = scmp.ne.s32.totalorder %s93, %s107
      %p109 = scmp.eq.s32.totalorder %s20, 0
      %p110 = por %p108, %p109
      %s112 = sadd.s32 %s111, 1
      %p115 = scmp.eq.s32.totalorder %s14, 1
      %p116 = scmp.ne.s32.totalorder %s111, %s113
      %p117 = scmp.eq.s32.totalorder %s14, 0
      %p118 = por %p116, %p117
      %p119 = scmp.ne.s32.totalorder %s111, %s113
      %p120 = scmp.eq.s32.totalorder %s19, 1
      %p121 = por %p119, %p120
      %p122 = scmp.ne.s32.totalorder %s113, %s114
      %p123 = scmp.eq.s32.totalorder %s19, 0
      %p124 = por %p122, %p123
      %p125 = scmp.ne.s32.totalorder %s113, %s114
      %p126 = scmp.eq.s32.totalorder %s20, 1
      %p127 = por %p125, %p126
      %p129 = scmp.ne.s32.totalorder %s114, %s128
      %p130 = scmp.eq.s32.totalorder %s20, 0
      %p131 = por %p129, %p130
      %s133 = sadd.s32 %s132, 1
      %p136 = scmp.eq.s32.totalorder %s14, 1
      %p137 = scmp.ne.s32.totalorder %s132, %s134
      %p138 = scmp.eq.s32.totalorder %s14, 0
      %p139 = por %p137, %p138
      %p140 = scmp.ne.s32.totalorder %s132, %s134
      %p141 = scmp.eq.s32.totalorder %s19, 1
      %p142 = por %p140, %p141
      %p143 = scmp.ne.s32.totalorder %s134, %s135
      %p144 = scmp.eq.s32.totalorder %s19, 0
      %p145 = por %p143, %p144
      %p146 = scmp.ne.s32.totalorder %s134, %s135
      %p147 = scmp.eq.s32.totalorder %s20, 1
      %p148 = por %p146, %p147
      %p150 = scmp.ne.s32.totalorder %s135, %s149
      %p151 = scmp.eq.s32.totalorder %s20, 0
      %p152 = por %p150, %p151
      %s153 = ssub.s32 %s21, %s33
      %s154 = ssub.s32 %s22, %s29
      %s155 = sor.u32 %s153, %s154
      %p156 = scmp.eq.s32.totalorder %s155, 0
      %s158 = sadd.s32 %s157, 1
      %s159 = scalar_select %p156, %s157, %s158
      %p162 = pneg %p156
      %p163 = scmp.eq.s32.totalorder %s14, 1
      %p164 = por %p162, %p163
      %p165 = scmp.ne.s32.totalorder %s157, %s160
      %p166 = scmp.eq.s32.totalorder %s14, 0
      %p167 = por %p165, %p166
      %p168 = scmp.ne.s32.totalorder %s157, %s160
      %p169 = scmp.eq.s32.totalorder %s19, 1
      %p170 = por %p168, %p169
      %p171 = scmp.ne.s32.totalorder %s160, %s161
      %p172 = scmp.eq.s32.totalorder %s19, 0
      %p173 = por %p171, %p172
      %p174 = scmp.ne.s32.totalorder %s160, %s161
      %p175 = scmp.eq.s32.totalorder %s20, 1
      %p176 = por %p174, %p175
      %p178 = scmp.ne.s32.totalorder %s161, %s177
      %p179 = scmp.eq.s32.totalorder %s20, 0
      %p180 = por %p178, %p179
      %p181 = scmp.le.s32.totalorder 1, %s14
      %p182 = scmp.lt.s32.totalorder %s14, 3
      %p183 = pnand %p181, %p182
      %p184 = pneg %p183
      // Predicated region
      $region9: #{tpu_custom_call.1} parent=5 // pred_check
        _
      $region10: #{tpu_custom_call.1} parent=5 // pred_check_branch
        %186 = sbr.rel (%p183) target = $region12
      $region11: #{tpu_custom_call.1} parent=5 // pred_region
        %s187 = ssub.s32 %s14, 1
        // Predicated region
        $region13: #{tpu_custom_call.1} parent=11 // pred_check
          %p188 = pneg %p103
        $region14: #{tpu_custom_call.1} parent=11 // pred_check_branch
          %190 = sbr.rel (%p188) target = $region16
        $region15: #{tpu_custom_call.1} parent=11 // pred_region
          _
        $region16: #{tpu_custom_call.1} parent=11 // pred_fallthru
          _
        // Predicated region
        $region17: #{tpu_custom_call.1} parent=11 // pred_check
          %p191 = pneg %p124
        $region18: #{tpu_custom_call.1} parent=11 // pred_check_branch
          %193 = sbr.rel (%p191) target = $region20
        $region19: #{tpu_custom_call.1} parent=11 // pred_region
          _
        $region20: #{tpu_custom_call.1} parent=11 // pred_fallthru
          _
        // Predicated region
        $region21: #{tpu_custom_call.1} parent=11 // pred_check
          %p194 = pneg %p145
        $region22: #{tpu_custom_call.1} parent=11 // pred_check_branch
          %196 = sbr.rel (%p194) target = $region24
        $region23: #{tpu_custom_call.1} parent=11 // pred_region
          _
        $region24: #{tpu_custom_call.1} parent=11 // pred_fallthru
          _
      $region12: #{tpu_custom_call.1} parent=5 // pred_fallthru
        _
      %p197 = scmp.lt.s32.totalorder %s14, 2
      // Predicated region
      $region25: #{tpu_custom_call.1} parent=5 // pred_check
        %p198 = pneg %p197
      $region26: #{tpu_custom_call.1} parent=5 // pred_check_branch
        %200 = sbr.rel (%p198) target = $region28
      $region27: #{tpu_custom_call.1} parent=5 // pred_region
        // Predicated region
        $region29: #{tpu_custom_call.1} parent=27 // pred_check
          %p201 = pneg %p48
        $region30: #{tpu_custom_call.1} parent=27 // pred_check_branch
          %203 = sbr.rel (%p201) target = $region32
        $region31: #{tpu_custom_call.1} parent=27 // pred_region
          %s204 = smul.u32 8, %s22
          %p205 = scmp.lt.s32.totalorder %s21, 1
          %s206 = scalar_select %p205, %s21, 1
          %p207 = scmp.lt.s32.totalorder %s204, 7
          %s208 = scalar_select %p207, %s204, 7
          %s209 = smul.addr %s206, 8
          %s210 = sadd.s32 %s208, %s209
          %s211 = smul.addr %s210, 8
          %s212 = scalar_lea.vmem %s0, %s211
          %s213 = smul.u32 8, %s22
        $region32: #{tpu_custom_call.1} parent=27 // pred_fallthru
          _
        // Predicated region
        $region33: #{tpu_custom_call.1} parent=27 // pred_check
          %p214 = pneg %p76
        $region34: #{tpu_custom_call.1} parent=27 // pred_check_branch
          %216 = sbr.rel (%p214) target = $region36
        $region35: #{tpu_custom_call.1} parent=27 // pred_region
          %s217 = smul.u32 8, %s22
          %p218 = scmp.lt.s32.totalorder %s21, 1
          %s219 = scalar_select %p218, %s21, 1
          %p220 = scmp.lt.s32.totalorder %s217, 7
          %s221 = scalar_select %p220, %s217, 7
          %s222 = smul.addr %s219, 8
          %s223 = sadd.s32 %s221, %s222
          %s224 = smul.addr %s223, 4
          %s225 = scalar_lea.vmem %s1, %s224
          %s226 = smul.u32 8, %s22
        $region36: #{tpu_custom_call.1} parent=27 // pred_fallthru
          _
      $region28: #{tpu_custom_call.1} parent=5 // pred_fallthru
        _
      %p227 = scmp.le.s32.totalorder 1, %s14
      %p228 = scmp.lt.s32.totalorder %s14, 3
      %p229 = pnand %p227, %p228
      %p230 = pneg %p229
      // Predicated region
      $region37: #{tpu_custom_call.1} parent=5 // pred_check
        _
      $region38: #{tpu_custom_call.1} parent=5 // pred_check_branch
        %232 = sbr.rel (%p229) target = $region40
      $region39: #{tpu_custom_call.1} parent=5 // pred_region
        %s233 = ssub.s32 %s14, 1
        %s234 = smul.u32 8, %s24
        %p235 = scmp.lt.s32.totalorder %s23, 1
        %s236 = scalar_select %p235, %s23, 1
        %p237 = scmp.lt.s32.totalorder %s234, 7
        %s238 = scalar_select %p237, %s234, 7
        %s239 = smul.addr %s236, 8
        %s240 = sadd.s32 %s238, %s239
        %s241 = smul.addr %s240, 8
        %s242 = scalar_lea.vmem %s0, %s241
        %p243 = pneg %p54
        %p244 = pneg %p51
        %s245 = smul.u32 8, %s24
        %p246 = scmp.lt.s32.totalorder %s23, 1
        %s247 = scalar_select %p246, %s23, 1
        %p248 = scmp.lt.s32.totalorder %s245, 7
        %s249 = scalar_select %p248, %s245, 7
        %s250 = smul.addr %s247, 8
        %s251 = sadd.s32 %s249, %s250
        %s252 = smul.addr %s251, 4
        %s253 = scalar_lea.vmem %s1, %s252
        %p254 = pneg %p82
        %p255 = pneg %p79
        %p256 = pneg %p103
        %p257 = pneg %p100
        %p258 = pneg %p124
        %p259 = pneg %p121
        %p260 = pneg %p145
        %p261 = pneg %p142
        %p262 = pneg %p173
        %p263 = pneg %p170
        %s264 = sand.u32 %s160, 1
        %s265 = scalar_lea.sflag [#allocation3], %s264
        %s266 = sand.u32 %s160, 1
        %s267 = smul.addr %s266, 32
        %s268 = scalar_lea.vmem [#allocation2], %s267
        %s269 = smul.u32 8, %s24
        %p270 = scmp.lt.s32.totalorder %s23, 1
        %s271 = scalar_select %p270, %s23, 1
        %p272 = scmp.lt.s32.totalorder %s269, 7
        %s273 = scalar_select %p272, %s269, 7
        %s274 = smul.addr %s271, 8
        %s275 = sadd.s32 %s273, %s274
        %s276 = smul.addr %s275, 8
        %s277 = scalar_lea.vmem %s0, %s276
        %s278 = smul.u32 8, %s24
        %s279 = smul.u32 8, %s24
        %p280 = scmp.lt.s32.totalorder %s23, 1
        %s281 = scalar_select %p280, %s23, 1
        %p282 = scmp.lt.s32.totalorder %s279, 7
        %s283 = scalar_select %p282, %s279, 7
        %s284 = smul.addr %s281, 8
        %s285 = sadd.s32 %s283, %s284
        %s286 = smul.addr %s285, 4
        %s287 = scalar_lea.vmem %s1, %s286
        %s288 = smul.u32 8, %s24
        %s289 = smul.u32 8, %s24
        %v291 = vld [vmem:[%s277] sm:$0xff]
        %v292 = vld [vmem:[%s277 + $0x8] sm:$0xff]
        %v293 = vld [vmem:[%s277 + $0x10] sm:$0xff]
        %v294 = vld [vmem:[%s277 + $0x18] sm:$0xff]
        %v295 = vld [vmem:[%s277 + $0x20] sm:$0xff]
        %v296 = vld [vmem:[%s277 + $0x28] sm:$0xff]
        %v297 = vld [vmem:[%s277 + $0x30] sm:$0xff]
        %v298 = vld [vmem:[%s277 + $0x38] sm:$0xff]
        %v299 = vld [vmem:[%s2] sm:$0xff]
        %vm300 = vcmask 64512
        %v302 = vsel %vm300, %v291, 0
        %v305 = vsel %vm300, %v292, 0
        %v308 = vsel %vm300, %v293, 0
        %v311 = vsel %vm300, %v294, 0
        %v314 = vsel %vm300, %v295, 0
        %v317 = vsel %vm300, %v296, 0
        %v320 = vsel %vm300, %v297, 0
        %v323 = vsel %vm300, %v298, 0
        %325 = vmatprep.subr.mxu0 0.0
        %326 = vmatpush1.msra.mxu0 %v299
        %327 = vmatprep.subr.mxu0 0.0
        %328 = vmatpush1.msra.mxu0 0.0
        %329 = vmatprep.subr.mxu0 0.0
        %330 = vmatpush1.msra.mxu0 0.0
        %331 = vmatprep.subr.mxu0 0.0
        %332 = vmatpush1.msra.mxu0 0.0
        %333 = vmatprep.subr.mxu0 0.0
        %334 = vmatpush1.msra.mxu0 0.0
        %335 = vmatprep.subr.mxu0 0.0
        %336 = vmatpush1.msra.mxu0 0.0
        %337 = vmatprep.subr.mxu0 0.0
        %338 = vmatpush1.msra.mxu0 0.0
        %339 = vmatprep.subr.mxu0 0.0
        %340 = vmatpush1.msra.mxu0 0.0
        %341 = vmatprep.subr.mxu0 0.0
        %342 = vmatpush1.msra.mxu0 0.0
        %343 = vmatprep.subr.mxu0 0.0
        %344 = vmatpush1.msra.mxu0 0.0
        %345 = vmatprep.subr.mxu0 0.0
        %346 = vmatpush1.msra.mxu0 0.0
        %347 = vmatprep.subr.mxu0 0.0
        %348 = vmatpush1.msra.mxu0 0.0
        %349 = vmatprep.subr.mxu0 0.0
        %350 = vmatpush1.msra.mxu0 0.0
        %351 = vmatprep.subr.mxu0 0.0
        %352 = vmatpush1.msra.mxu0 0.0
        %353 = vmatprep.subr.mxu0 0.0
        %354 = vmatpush1.msra.mxu0 0.0
        %355 = vmatprep.subr.mxu0 0.0
        %356 = vmatpush1.msra.mxu0 0.0
        %357 = vmatprep.subr.mxu0 0.0
        %358 = vmatpush1.msra.mxu0 0.0
        %359 = vmatprep.subr.mxu0 0.0
        %360 = vmatpush1.msra.mxu0 0.0
        %361 = vmatprep.subr.mxu0 0.0
        %362 = vmatpush1.msra.mxu0 0.0
        %363 = vmatprep.subr.mxu0 0.0
        %364 = vmatpush1.msra.mxu0 0.0
        %365 = vmatprep.subr.mxu0 0.0
        %366 = vmatpush1.msra.mxu0 0.0
        %367 = vmatprep.subr.mxu0 0.0
        %368 = vmatpush1.msra.mxu0 0.0
        %369 = vmatprep.subr.mxu0 0.0
        %370 = vmatpush1.msra.mxu0 0.0
        %371 = vmatprep.subr.mxu0 0.0
        %372 = vmatpush1.msra.mxu0 0.0
        %373 = vmatprep.subr.mxu0 0.0
        %374 = vmatpush1.msra.mxu0 0.0
        %375 = vmatprep.subr.mxu0 0.0
        %376 = vmatpush1.msra.mxu0 0.0
        %377 = vmatprep.subr.mxu0 0.0
        %378 = vmatpush1.msra.mxu0 0.0
        %379 = vmatprep.subr.mxu0 0.0
        %380 = vmatpush1.msra.mxu0 0.0
        %381 = vmatprep.subr.mxu0 0.0
        %382 = vmatpush1.msra.mxu0 0.0
        %383 = vmatprep.subr.mxu0 0.0
        %384 = vmatpush1.msra.mxu0 0.0
        %385 = vmatprep.subr.mxu0 0.0
        %386 = vmatpush1.msra.mxu0 0.0
        %387 = vmatprep.subr.mxu0 0.0
        %388 = vmatpush1.msra.mxu0 0.0
        %389 = vmatprep.mubr.f32.mxu0 0.0
        %390 = vmatmul.mubr.f32.gmra.mrb[0].mxu0 %v302
        %v391 = vpop.f32.mrb[0].mxu0
        %v392 = vadd.f32 0.0, %v391
        %v393 = vpop.f32.mrb[0].mxu0
        %394 = vmatprep.mubr.f32.mxu0 0.0
        %395 = vmatmul.mubr.f32.gmra.mrb[0].mxu0 %v305
        %v396 = vpop.f32.mrb[0].mxu0
        %v397 = vadd.f32 0.0, %v396
        %v398 = vpop.f32.mrb[0].mxu0
        %399 = vmatprep.mubr.f32.mxu0 0.0
        %400 = vmatmul.mubr.f32.gmra.mrb[0].mxu0 %v308
        %v401 = vpop.f32.mrb[0].mxu0
        %v402 = vadd.f32 0.0, %v401
        %v403 = vpop.f32.mrb[0].mxu0
        %404 = vmatprep.mubr.f32.mxu0 0.0
        %405 = vmatmul.mubr.f32.gmra.mrb[0].mxu0 %v311
        %v406 = vpop.f32.mrb[0].mxu0
        %v407 = vadd.f32 0.0, %v406
        %v408 = vpop.f32.mrb[0].mxu0
        %409 = vmatprep.mubr.f32.mxu0 0.0
        %410 = vmatmul.mubr.f32.gmra.mrb[0].mxu0 %v314
        %v411 = vpop.f32.mrb[0].mxu0
        %v412 = vadd.f32 0.0, %v411
        %v413 = vpop.f32.mrb[0].mxu0
        %414 = vmatprep.mubr.f32.mxu0 0.0
        %415 = vmatmul.mubr.f32.gmra.mrb[0].mxu0 %v317
        %v416 = vpop.f32.mrb[0].mxu0
        %v417 = vadd.f32 0.0, %v416
        %v418 = vpop.f32.mrb[0].mxu0
        %419 = vmatprep.mubr.f32.mxu0 0.0
        %420 = vmatmul.mubr.f32.gmra.mrb[0].mxu0 %v320
        %v421 = vpop.f32.mrb[0].mxu0
        %v422 = vadd.f32 0.0, %v421
        %v423 = vpop.f32.mrb[0].mxu0
        %424 = vmatprep.mubr.f32.mxu0 0.0
        %425 = vmatmul.mubr.f32.gmra.mrb[0].mxu0 %v323
        %v426 = vpop.f32.mrb[0].mxu0
        %v427 = vadd.f32 0.0, %v426
        %v428 = vpop.f32.mrb[0].mxu0
        %429 = vdwg.mxu0
        %v430 = vtanh.pop %v392
        %v431 = vtanh.pop %v397
        %v432 = vtanh.pop %v402
        %v433 = vtanh.pop %v407
        %v434 = vtanh.pop %v412
        %v435 = vtanh.pop %v417
        %v436 = vtanh.pop %v422
        %v437 = vtanh.pop %v427
        %v438 = vlaneseq
        %v439 = vand.u32 %v438, 127
        %vm440 = vcmp.eq.s32.totalorder %v439, 25
        %v441 = vsel %vm440, 1, 0
        %v442 = vcvt.s32.f32 %v441
        %v443 = vadd.f32 %v430, %v442
        %v444 = vadd.f32 %v431, %v442
        %v445 = vadd.f32 %v432, %v442
        %v446 = vadd.f32 %v433, %v442
        %v447 = vadd.f32 %v434, %v442
        %v448 = vadd.f32 %v435, %v442
        %v449 = vadd.f32 %v436, %v442
        %v450 = vadd.f32 %v437, %v442
        %451 = vset.pattern.permute.xlu0 4
        %452 = vperm.xlu0 %451, %v291
        %v453 = vpop.permute.xlu0 %452
        %455 = vset.pattern.permute.xlu0 4
        %456 = vperm.xlu0 %455, %v292
        %v457 = vpop.permute.xlu0 %456
        %459 = vset.pattern.permute.xlu0 4
        %460 = vperm.xlu0 %459, %v293
        %v461 = vpop.permute.xlu0 %460
        %463 = vset.pattern.permute.xlu0 4
        %464 = vperm.xlu0 %463, %v294
        %v465 = vpop.permute.xlu0 %464
        %467 = vset.pattern.permute.xlu0 4
        %468 = vperm.xlu0 %467, %v295
        %v469 = vpop.permute.xlu0 %468
        %471 = vset.pattern.permute.xlu0 4
        %472 = vperm.xlu0 %471, %v296
        %v473 = vpop.permute.xlu0 %472
        %475 = vset.pattern.permute.xlu0 4
        %476 = vperm.xlu0 %475, %v297
        %v477 = vpop.permute.xlu0 %476
        %479 = vset.pattern.permute.xlu0 4
        %480 = vperm.xlu0 %479, %v298
        %v481 = vpop.permute.xlu0 %480
        %483 = vset.pattern.permute.xlu0 5
        %484 = vperm.xlu0 %483, %v291
        %v485 = vpop.permute.xlu0 %484
        %487 = vset.pattern.permute.xlu0 5
        %488 = vperm.xlu0 %487, %v292
        %v489 = vpop.permute.xlu0 %488
        %491 = vset.pattern.permute.xlu0 5
        %492 = vperm.xlu0 %491, %v293
        %v493 = vpop.permute.xlu0 %492
        %495 = vset.pattern.permute.xlu0 5
        %496 = vperm.xlu0 %495, %v294
        %v497 = vpop.permute.xlu0 %496
        %499 = vset.pattern.permute.xlu0 5
        %500 = vperm.xlu0 %499, %v295
        %v501 = vpop.permute.xlu0 %500
        %503 = vset.pattern.permute.xlu0 5
        %504 = vperm.xlu0 %503, %v296
        %v505 = vpop.permute.xlu0 %504
        %507 = vset.pattern.permute.xlu0 5
        %508 = vperm.xlu0 %507, %v297
        %v509 = vpop.permute.xlu0 %508
        %511 = vset.pattern.permute.xlu0 5
        %512 = vperm.xlu0 %511, %v298
        %v513 = vpop.permute.xlu0 %512
        %515 = vset.pattern.permute.xlu0 6
        %516 = vperm.xlu0 %515, %v291
        %v517 = vpop.permute.xlu0 %516
        %519 = vset.pattern.permute.xlu0 6
        %520 = vperm.xlu0 %519, %v292
        %v521 = vpop.permute.xlu0 %520
        %523 = vset.pattern.permute.xlu0 6
        %524 = vperm.xlu0 %523, %v293
        %v525 = vpop.permute.xlu0 %524
        %527 = vset.pattern.permute.xlu0 6
        %528 = vperm.xlu0 %527, %v294
        %v529 = vpop.permute.xlu0 %528
        %531 = vset.pattern.permute.xlu0 6
        %532 = vperm.xlu0 %531, %v295
        %v533 = vpop.permute.xlu0 %532
        %535 = vset.pattern.permute.xlu0 6
        %536 = vperm.xlu0 %535, %v296
        %v537 = vpop.permute.xlu0 %536
        %539 = vset.pattern.permute.xlu0 6
        %540 = vperm.xlu0 %539, %v297
        %v541 = vpop.permute.xlu0 %540
        %543 = vset.pattern.permute.xlu0 6
        %544 = vperm.xlu0 %543, %v298
        %v545 = vpop.permute.xlu0 %544
        %547 = vset.pattern.permute.xlu0 7
        %548 = vperm.xlu0 %547, %v291
        %v549 = vpop.permute.xlu0 %548
        %551 = vset.pattern.permute.xlu0 7
        %552 = vperm.xlu0 %551, %v292
        %v553 = vpop.permute.xlu0 %552
        %555 = vset.pattern.permute.xlu0 7
        %556 = vperm.xlu0 %555, %v293
        %v557 = vpop.permute.xlu0 %556
        %559 = vset.pattern.permute.xlu0 7
        %560 = vperm.xlu0 %559, %v294
        %v561 = vpop.permute.xlu0 %560
        %563 = vset.pattern.permute.xlu0 7
        %564 = vperm.xlu0 %563, %v295
        %v565 = vpop.permute.xlu0 %564
        %567 = vset.pattern.permute.xlu0 7
        %568 = vperm.xlu0 %567, %v296
        %v569 = vpop.permute.xlu0 %568
        %571 = vset.pattern.permute.xlu0 7
        %572 = vperm.xlu0 %571, %v297
        %v573 = vpop.permute.xlu0 %572
        %575 = vset.pattern.permute.xlu0 7
        %576 = vperm.xlu0 %575, %v298
        %v577 = vpop.permute.xlu0 %576
        %vm579 = vcmask 261120
        %v580 = vsel %vm579, %v453, %v485
        %v581 = vsel %vm579, %v457, %v489
        %v582 = vsel %vm579, %v461, %v493
        %v583 = vsel %vm579, %v465, %v497
        %v584 = vsel %vm579, %v469, %v501
        %v585 = vsel %vm579, %v473, %v505
        %v586 = vsel %vm579, %v477, %v509
        %v587 = vsel %vm579, %v481, %v513
        %vm588 = vcmask 523264
        %v589 = vsel %vm588, %v580, %v517
        %v590 = vsel %vm588, %v581, %v521
        %v591 = vsel %vm588, %v582, %v525
        %v592 = vsel %vm588, %v583, %v529
        %v593 = vsel %vm588, %v584, %v533
        %v594 = vsel %vm588, %v585, %v537
        %v595 = vsel %vm588, %v586, %v541
        %v596 = vsel %vm588, %v587, %v545
        %vm597 = vcmask 785408
        %v598 = vsel %vm597, %v589, %v549
        %v599 = vsel %vm597, %v590, %v553
        %v600 = vsel %vm597, %v591, %v557
        %v601 = vsel %vm597, %v592, %v561
        %v602 = vsel %vm597, %v593, %v565
        %v603 = vsel %vm597, %v594, %v569
        %v604 = vsel %vm597, %v595, %v573
        %v605 = vsel %vm597, %v596, %v577
        %v606 = vsel %vm588, %v453, %v485
        %v607 = vsel %vm588, %v457, %v489
        %v608 = vsel %vm588, %v461, %v493
        %v609 = vsel %vm588, %v465, %v497
        %v610 = vsel %vm588, %v469, %v501
        %v611 = vsel %vm588, %v473, %v505
        %v612 = vsel %vm588, %v477, %v509
        %v613 = vsel %vm588, %v481, %v513
        %v614 = vsel %vm588, %v517, %v549
        %v615 = vsel %vm588, %v521, %v553
        %v616 = vsel %vm588, %v525, %v557
        %v617 = vsel %vm588, %v529, %v561
        %v618 = vsel %vm588, %v533, %v565
        %v619 = vsel %vm588, %v537, %v569
        %v620 = vsel %vm588, %v541, %v573
        %v621 = vsel %vm588, %v545, %v577
        %630 = vrot.lane.b32.xlu0 %v443, 32
        %v631 = vpop.permute.xlu0 %630
        %632 = vrot.lane.b32.xlu0 %v444, 32
        %v633 = vpop.permute.xlu0 %632
        %634 = vrot.lane.b32.xlu0 %v445, 32
        %v635 = vpop.permute.xlu0 %634
        %636 = vrot.lane.b32.xlu0 %v446, 32
        %v637 = vpop.permute.xlu0 %636
        %638 = vrot.lane.b32.xlu0 %v447, 32
        %v639 = vpop.permute.xlu0 %638
        %640 = vrot.lane.b32.xlu0 %v448, 32
        %v641 = vpop.permute.xlu0 %640
        %642 = vrot.lane.b32.xlu0 %v449, 32
        %v643 = vpop.permute.xlu0 %642
        %644 = vrot.lane.b32.xlu0 %v450, 32
        %v645 = vpop.permute.xlu0 %644
        %654 = vrot.lane.b32.xlu0 %v443, 64
        %v655 = vpop.permute.xlu0 %654
        %656 = vrot.lane.b32.xlu0 %v444, 64
        %v657 = vpop.permute.xlu0 %656
        %658 = vrot.lane.b32.xlu0 %v445, 64
        %v659 = vpop.permute.xlu0 %658
        %660 = vrot.lane.b32.xlu0 %v446, 64
        %v661 = vpop.permute.xlu0 %660
        %662 = vrot.lane.b32.xlu0 %v447, 64
        %v663 = vpop.permute.xlu0 %662
        %664 = vrot.lane.b32.xlu0 %v448, 64
        %v665 = vpop.permute.xlu0 %664
        %666 = vrot.lane.b32.xlu0 %v449, 64
        %v667 = vpop.permute.xlu0 %666
        %668 = vrot.lane.b32.xlu0 %v450, 64
        %v669 = vpop.permute.xlu0 %668
        %678 = vrot.lane.b32.xlu0 %v443, 96
        %v679 = vpop.permute.xlu0 %678
        %680 = vrot.lane.b32.xlu0 %v444, 96
        %v681 = vpop.permute.xlu0 %680
        %682 = vrot.lane.b32.xlu0 %v445, 96
        %v683 = vpop.permute.xlu0 %682
        %684 = vrot.lane.b32.xlu0 %v446, 96
        %v685 = vpop.permute.xlu0 %684
        %686 = vrot.lane.b32.xlu0 %v447, 96
        %v687 = vpop.permute.xlu0 %686
        %688 = vrot.lane.b32.xlu0 %v448, 96
        %v689 = vpop.permute.xlu0 %688
        %690 = vrot.lane.b32.xlu0 %v449, 96
        %v691 = vpop.permute.xlu0 %690
        %692 = vrot.lane.b32.xlu0 %v450, 96
        %v693 = vpop.permute.xlu0 %692
        %v702 = vsel %vm579, %v443, %v631
        %v703 = vsel %vm579, %v444, %v633
        %v704 = vsel %vm579, %v445, %v635
        %v705 = vsel %vm579, %v446, %v637
        %v706 = vsel %vm579, %v447, %v639
        %v707 = vsel %vm579, %v448, %v641
        %v708 = vsel %vm579, %v449, %v643
        %v709 = vsel %vm579, %v450, %v645
        %v710 = vsel %vm588, %v702, %v655
        %v711 = vsel %vm588, %v703, %v657
        %v712 = vsel %vm588, %v704, %v659
        %v713 = vsel %vm588, %v705, %v661
        %v714 = vsel %vm588, %v706, %v663
        %v715 = vsel %vm588, %v707, %v665
        %v716 = vsel %vm588, %v708, %v667
        %v717 = vsel %vm588, %v709, %v669
        %v718 = vsel %vm597, %v710, %v679
        %v719 = vsel %vm597, %v711, %v681
        %v720 = vsel %vm597, %v712, %v683
        %v721 = vsel %vm597, %v713, %v685
        %v722 = vsel %vm597, %v714, %v687
        %v723 = vsel %vm597, %v715, %v689
        %v724 = vsel %vm597, %v716, %v691
        %v725 = vsel %vm597, %v717, %v693
        %v726 = vmul.f32 %v718, %v598
        %v727 = vmul.f32 %v719, %v599
        %v728 = vmul.f32 %v720, %v600
        %v729 = vmul.f32 %v721, %v601
        %v730 = vmul.f32 %v722, %v602
        %v731 = vmul.f32 %v723, %v603
        %v732 = vmul.f32 %v724, %v604
        %v733 = vmul.f32 %v725, %v605
        %v734 = vpack.c.bf16 %v727, %v726
        %v735 = vpack.c.bf16 %v729, %v728
        %v736 = vpack.c.bf16 %v731, %v730
        %v737 = vpack.c.bf16 %v733, %v732
        %v738 = vld [vmem:[%s3] sm:$0xf]
        %v739 = vld [vmem:[%s3 + $0x4] sm:$0xf]
        %v740 = vld [vmem:[%s3 + $0x8] sm:$0xf]
        %v741 = vld [vmem:[%s3 + $0xc] sm:$0xf]
        %v742 = vld [vmem:[%s3 + $0x10] sm:$0xf]
        %v743 = vld [vmem:[%s3 + $0x14] sm:$0xf]
        %v744 = vld [vmem:[%s3 + $0x18] sm:$0xf]
        %v745 = vld [vmem:[%s3 + $0x1c] sm:$0xf]
        %v746 = vld [vmem:[%s3 + $0x20] sm:$0xf]
        %v747 = vld [vmem:[%s3 + $0x24] sm:$0xf]
        %v748 = vld [vmem:[%s3 + $0x28] sm:$0xf]
        %v749 = vld [vmem:[%s3 + $0x2c] sm:$0xf]
        %v750 = vld [vmem:[%s3 + $0x30] sm:$0xf]
        %v751 = vld [vmem:[%s3 + $0x34] sm:$0xf]
        %v752 = vld [vmem:[%s3 + $0x38] sm:$0xf]
        %v753 = vld [vmem:[%s3 + $0x3c] sm:$0xf]
        %v770 = vunpack.c.l.b16 %v738
        %v771 = vunpack.c.l.b16 %v739
        %v772 = vunpack.c.l.b16 %v740
        %v773 = vunpack.c.l.b16 %v741
        %v774 = vunpack.c.l.b16 %v742
        %v775 = vunpack.c.l.b16 %v743
        %v776 = vunpack.c.l.b16 %v744
        %v777 = vunpack.c.l.b16 %v745
        %v778 = vunpack.c.l.b16 %v746
        %v779 = vunpack.c.l.b16 %v747
        %v780 = vunpack.c.l.b16 %v748
        %v781 = vunpack.c.l.b16 %v749
        %v782 = vunpack.c.l.b16 %v750
        %v783 = vunpack.c.l.b16 %v751
        %v784 = vunpack.c.l.b16 %v752
        %v785 = vunpack.c.l.b16 %v753
        %v786 = vpack.c.b16 %v771, %v770
        %v787 = vpack.c.b16 %v773, %v772
        %v788 = vpack.c.b16 %v775, %v774
        %v789 = vpack.c.b16 %v777, %v776
        %v790 = vpack.c.b16 %v779, %v778
        %v791 = vpack.c.b16 %v781, %v780
        %v792 = vpack.c.b16 %v783, %v782
        %v793 = vpack.c.b16 %v785, %v784
        %802 = vmatprep.subr.bf16.mxu0 0
        %803 = vmatpush1.bf16.msra.mxu0 %v786
        %804 = vmatprep.subr.bf16.mxu0 0
        %805 = vmatpush1.bf16.msra.mxu0 %v787
        %806 = vmatprep.subr.bf16.mxu0 0
        %807 = vmatpush1.bf16.msra.mxu0 %v788
        %808 = vmatprep.subr.bf16.mxu0 0
        %809 = vmatpush1.bf16.msra.mxu0 %v789
        %810 = vmatprep.subr.bf16.mxu0 0
        %811 = vmatpush1.bf16.msra.mxu0 %v790
        %812 = vmatprep.subr.bf16.mxu0 0
        %813 = vmatpush1.bf16.msra.mxu0 %v791
        %814 = vmatprep.subr.bf16.mxu0 0
        %815 = vmatpush1.bf16.msra.mxu0 %v792
        %816 = vmatprep.subr.bf16.mxu0 0
        %817 = vmatpush1.bf16.msra.mxu0 %v793
        %818 = vmatprep.subr.bf16.mxu0 0
        %819 = vmatpush1.bf16.msra.mxu0 0
        %820 = vmatprep.subr.bf16.mxu0 0
        %821 = vmatpush1.bf16.msra.mxu0 0
        %822 = vmatprep.subr.bf16.mxu0 0
        %823 = vmatpush1.bf16.msra.mxu0 0
        %824 = vmatprep.subr.bf16.mxu0 0
        %825 = vmatpush1.bf16.msra.mxu0 0
        %826 = vmatprep.subr.bf16.mxu0 0
        %827 = vmatpush1.bf16.msra.mxu0 0
        %828 = vmatprep.subr.bf16.mxu0 0
        %829 = vmatpush1.bf16.msra.mxu0 0
        %830 = vmatprep.subr.bf16.mxu0 0
        %831 = vmatpush1.bf16.msra.mxu0 0
        %832 = vmatprep.subr.bf16.mxu0 0
        %833 = vmatpush1.bf16.msra.mxu0 0
        %834 = vmatprep.mubr.bf16.mxu0 0
        %835 = vmatmul.mubr.bf16.gmra.mrb[0].mxu0 %v734
        %v836 = vpop.f32.mrb[0].mxu0
        %v837 = vadd.f32 0.0, %v836
        %v838 = vpop.f32.mrb[0].mxu0
        %v839 = vpop.f32.mrb[0].mxu0
        %v840 = vadd.f32 0.0, %v839
        %v841 = vpop.f32.mrb[0].mxu0
        %842 = vmatprep.mubr.bf16.mxu0 0
        %843 = vmatmul.mubr.bf16.gmra.mrb[0].mxu0 %v735
        %v844 = vpop.f32.mrb[0].mxu0
        %v845 = vadd.f32 0.0, %v844
        %v846 = vpop.f32.mrb[0].mxu0
        %v847 = vpop.f32.mrb[0].mxu0
        %v848 = vadd.f32 0.0, %v847
        %v849 = vpop.f32.mrb[0].mxu0
        %850 = vmatprep.mubr.bf16.mxu0 0
        %851 = vmatmul.mubr.bf16.gmra.mrb[0].mxu0 %v736
        %v852 = vpop.f32.mrb[0].mxu0
        %v853 = vadd.f32 0.0, %v852
        %v854 = vpop.f32.mrb[0].mxu0
        %v855 = vpop.f32.mrb[0].mxu0
        %v856 = vadd.f32 0.0, %v855
        %v857 = vpop.f32.mrb[0].mxu0
        %858 = vmatprep.mubr.bf16.mxu0 0
        %859 = vmatmul.mubr.bf16.gmra.mrb[0].mxu0 %v737
        %v860 = vpop.f32.mrb[0].mxu0
        %v861 = vadd.f32 0.0, %v860
        %v862 = vpop.f32.mrb[0].mxu0
        %v863 = vpop.f32.mrb[0].mxu0
        %v864 = vadd.f32 0.0, %v863
        %v865 = vpop.f32.mrb[0].mxu0
        %866 = vdwg.mxu0
        %v867 = vtanh.pop %v837
        %v868 = vtanh.pop %v840
        %v869 = vtanh.pop %v845
        %v870 = vtanh.pop %v848
        %v871 = vtanh.pop %v853
        %v872 = vtanh.pop %v856
        %v873 = vtanh.pop %v861
        %v874 = vtanh.pop %v864
        %883 = vrot.lane.b32.xlu0 %v430, 25
        %v884 = vpop.permute.xlu0 %883
        %885 = vrot.lane.b32.xlu0 %v431, 25
        %v886 = vpop.permute.xlu0 %885
        %887 = vrot.lane.b32.xlu0 %v432, 25
        %v888 = vpop.permute.xlu0 %887
        %889 = vrot.lane.b32.xlu0 %v433, 25
        %v890 = vpop.permute.xlu0 %889
        %891 = vrot.lane.b32.xlu0 %v434, 25
        %v892 = vpop.permute.xlu0 %891
        %893 = vrot.lane.b32.xlu0 %v435, 25
        %v894 = vpop.permute.xlu0 %893
        %895 = vrot.lane.b32.xlu0 %v436, 25
        %v896 = vpop.permute.xlu0 %895
        %897 = vrot.lane.b32.xlu0 %v437, 25
        %v898 = vpop.permute.xlu0 %897
        %vm907 = vcmask 203776
        %v908 = vsel %vm907, %v430, %v884
        %v909 = vsel %vm907, %v431, %v886
        %v910 = vsel %vm907, %v432, %v888
        %v911 = vsel %vm907, %v433, %v890
        %v912 = vsel %vm907, %v434, %v892
        %v913 = vsel %vm907, %v435, %v894
        %v914 = vsel %vm907, %v436, %v896
        %v915 = vsel %vm907, %v437, %v898
        %vm916 = vcmask 408576
        %v917 = vsel %vm916, %v908, 0.0
        %v918 = vsel %vm916, %v909, 0.0
        %v919 = vsel %vm916, %v910, 0.0
        %v920 = vsel %vm916, %v911, 0.0
        %v921 = vsel %vm916, %v912, 0.0
        %v922 = vsel %vm916, %v913, 0.0
        %v923 = vsel %vm916, %v914, 0.0
        %v924 = vsel %vm916, %v915, 0.0
        %v925 = vadd.f32 %v867, %v917
        %v926 = vadd.f32 %v868, %v918
        %v927 = vadd.f32 %v869, %v919
        %v928 = vadd.f32 %v870, %v920
        %v929 = vadd.f32 %v871, %v921
        %v930 = vadd.f32 %v872, %v922
        %v931 = vadd.f32 %v873, %v923
        %v932 = vadd.f32 %v874, %v924
        %vm933 = vcmp.eq.s32.totalorder %v439, 50
        %v934 = vsel %vm933, 1, 0
        %v935 = vcvt.s32.f32 %v934
        %v936 = vadd.f32 %v925, %v935
        %v937 = vadd.f32 %v926, %v935
        %v938 = vadd.f32 %v927, %v935
        %v939 = vadd.f32 %v928, %v935
        %v940 = vadd.f32 %v929, %v935
        %v941 = vadd.f32 %v930, %v935
        %v942 = vadd.f32 %v931, %v935
        %v943 = vadd.f32 %v932, %v935
        %952 = vrot.lane.b32.xlu0 %v936, 64
        %v953 = vpop.permute.xlu0 %952
        %954 = vrot.lane.b32.xlu0 %v937, 64
        %v955 = vpop.permute.xlu0 %954
        %956 = vrot.lane.b32.xlu0 %v938, 64
        %v957 = vpop.permute.xlu0 %956
        %958 = vrot.lane.b32.xlu0 %v939, 64
        %v959 = vpop.permute.xlu0 %958
        %960 = vrot.lane.b32.xlu0 %v940, 64
        %v961 = vpop.permute.xlu0 %960
        %962 = vrot.lane.b32.xlu0 %v941, 64
        %v963 = vpop.permute.xlu0 %962
        %964 = vrot.lane.b32.xlu0 %v942, 64
        %v965 = vpop.permute.xlu0 %964
        %966 = vrot.lane.b32.xlu0 %v943, 64
        %v967 = vpop.permute.xlu0 %966
        %v976 = vsel %vm588, %v936, %v953
        %v977 = vsel %vm588, %v937, %v955
        %v978 = vsel %vm588, %v938, %v957
        %v979 = vsel %vm588, %v939, %v959
        %v980 = vsel %vm588, %v940, %v961
        %v981 = vsel %vm588, %v941, %v963
        %v982 = vsel %vm588, %v942, %v965
        %v983 = vsel %vm588, %v943, %v967
        %v984 = vmul.f32 %v976, %v606
        %v985 = vmul.f32 %v976, %v614
        %v986 = vmul.f32 %v977, %v607
        %v987 = vmul.f32 %v977, %v615
        %v988 = vmul.f32 %v978, %v608
        %v989 = vmul.f32 %v978, %v616
        %v990 = vmul.f32 %v979, %v609
        %v991 = vmul.f32 %v979, %v617
        %v992 = vmul.f32 %v980, %v610
        %v993 = vmul.f32 %v980, %v618
        %v994 = vmul.f32 %v981, %v611
        %v995 = vmul.f32 %v981, %v619
        %v996 = vmul.f32 %v982, %v612
        %v997 = vmul.f32 %v982, %v620
        %v998 = vmul.f32 %v983, %v613
        %v999 = vmul.f32 %v983, %v621
        %v1000 = vpack.c.bf16 %v986, %v984
        %v1001 = vpack.c.bf16 %v987, %v985
        %v1002 = vpack.c.bf16 %v990, %v988
        %v1003 = vpack.c.bf16 %v991, %v989
        %v1004 = vpack.c.bf16 %v994, %v992
        %v1005 = vpack.c.bf16 %v995, %v993
        %v1006 = vpack.c.bf16 %v998, %v996
        %v1007 = vpack.c.bf16 %v999, %v997
        %v1008 = vld [vmem:[%s4] sm:$0xf]
        %v1009 = vld [vmem:[%s4 + $0x4] sm:$0xf]
        %v1010 = vld [vmem:[%s4 + $0x8] sm:$0xf]
        %v1011 = vld [vmem:[%s4 + $0xc] sm:$0xf]
        %v1012 = vld [vmem:[%s4 + $0x10] sm:$0xf]
        %v1013 = vld [vmem:[%s4 + $0x14] sm:$0xf]
        %v1014 = vld [vmem:[%s4 + $0x18] sm:$0xf]
        %v1015 = vld [vmem:[%s4 + $0x1c] sm:$0xf]
        %v1016 = vld [vmem:[%s4 + $0x20] sm:$0xf]
        %v1017 = vld [vmem:[%s4 + $0x24] sm:$0xf]
        %v1018 = vld [vmem:[%s4 + $0x28] sm:$0xf]
        %v1019 = vld [vmem:[%s4 + $0x2c] sm:$0xf]
        %v1020 = vld [vmem:[%s4 + $0x30] sm:$0xf]
        %v1021 = vld [vmem:[%s4 + $0x34] sm:$0xf]
        %v1022 = vld [vmem:[%s4 + $0x38] sm:$0xf]
        %v1023 = vld [vmem:[%s4 + $0x3c] sm:$0xf]
        %v1024 = vld [vmem:[%s4 + $0x40] sm:$0xf]
        %v1025 = vld [vmem:[%s4 + $0x44] sm:$0xf]
        %v1026 = vld [vmem:[%s4 + $0x48] sm:$0xf]
        %v1027 = vld [vmem:[%s4 + $0x4c] sm:$0xf]
        %v1028 = vld [vmem:[%s4 + $0x50] sm:$0xf]
        %v1029 = vld [vmem:[%s4 + $0x54] sm:$0xf]
        %v1030 = vld [vmem:[%s4 + $0x58] sm:$0xf]
        %v1031 = vld [vmem:[%s4 + $0x5c] sm:$0xf]
        %v1032 = vld [vmem:[%s4 + $0x60] sm:$0xf]
        %v1033 = vld [vmem:[%s4 + $0x64] sm:$0xf]
        %v1034 = vld [vmem:[%s4 + $0x68] sm:$0xf]
        %v1035 = vld [vmem:[%s4 + $0x6c] sm:$0xf]
        %v1036 = vld [vmem:[%s4 + $0x70] sm:$0xf]
        %v1037 = vld [vmem:[%s4 + $0x74] sm:$0xf]
        %v1038 = vld [vmem:[%s4 + $0x78] sm:$0xf]
        %v1039 = vld [vmem:[%s4 + $0x7c] sm:$0xf]
        %v1072 = vunpack.c.l.b16 %v1008
        %v1073 = vunpack.c.l.b16 %v1009
        %v1074 = vunpack.c.l.b16 %v1010
        %v1075 = vunpack.c.l.b16 %v1011
        %v1076 = vunpack.c.l.b16 %v1012
        %v1077 = vunpack.c.l.b16 %v1013
        %v1078 = vunpack.c.l.b16 %v1014
        %v1079 = vunpack.c.l.b16 %v1015
        %v1080 = vunpack.c.l.b16 %v1016
        %v1081 = vunpack.c.l.b16 %v1017
        %v1082 = vunpack.c.l.b16 %v1018
        %v1083 = vunpack.c.l.b16 %v1019
        %v1084 = vunpack.c.l.b16 %v1020
        %v1085 = vunpack.c.l.b16 %v1021
        %v1086 = vunpack.c.l.b16 %v1022
        %v1087 = vunpack.c.l.b16 %v1023
        %v1088 = vunpack.c.l.b16 %v1024
        %v1089 = vunpack.c.l.b16 %v1025
        %v1090 = vunpack.c.l.b16 %v1026
        %v1091 = vunpack.c.l.b16 %v1027
        %v1092 = vunpack.c.l.b16 %v1028
        %v1093 = vunpack.c.l.b16 %v1029
        %v1094 = vunpack.c.l.b16 %v1030
        %v1095 = vunpack.c.l.b16 %v1031
        %v1096 = vunpack.c.l.b16 %v1032
        %v1097 = vunpack.c.l.b16 %v1033
        %v1098 = vunpack.c.l.b16 %v1034
        %v1099 = vunpack.c.l.b16 %v1035
        %v1100 = vunpack.c.l.b16 %v1036
        %v1101 = vunpack.c.l.b16 %v1037
        %v1102 = vunpack.c.l.b16 %v1038
        %v1103 = vunpack.c.l.b16 %v1039
        %v1104 = vpack.c.b16 %v1073, %v1072
        %v1105 = vpack.c.b16 %v1075, %v1074
        %v1106 = vpack.c.b16 %v1077, %v1076
        %v1107 = vpack.c.b16 %v1079, %v1078
        %v1108 = vpack.c.b16 %v1081, %v1080
        %v1109 = vpack.c.b16 %v1083, %v1082
        %v1110 = vpack.c.b16 %v1085, %v1084
        %v1111 = vpack.c.b16 %v1087, %v1086
        %v1112 = vpack.c.b16 %v1089, %v1088
        %v1113 = vpack.c.b16 %v1091, %v1090
        %v1114 = vpack.c.b16 %v1093, %v1092
        %v1115 = vpack.c.b16 %v1095, %v1094
        %v1116 = vpack.c.b16 %v1097, %v1096
        %v1117 = vpack.c.b16 %v1099, %v1098
        %v1118 = vpack.c.b16 %v1101, %v1100
        %v1119 = vpack.c.b16 %v1103, %v1102
        %1136 = vmatprep.subr.bf16.mxu0 0
        %1137 = vmatpush1.bf16.msra.mxu0 %v1104
        %1138 = vmatprep.subr.bf16.mxu0 0
        %1139 = vmatpush1.bf16.msra.mxu0 %v1105
        %1140 = vmatprep.subr.bf16.mxu0 0
        %1141 = vmatpush1.bf16.msra.mxu0 %v1106
        %1142 = vmatprep.subr.bf16.mxu0 0
        %1143 = vmatpush1.bf16.msra.mxu0 %v1107
        %1144 = vmatprep.subr.bf16.mxu0 0
        %1145 = vmatpush1.bf16.msra.mxu0 %v1108
        %1146 = vmatprep.subr.bf16.mxu0 0
        %1147 = vmatpush1.bf16.msra.mxu0 %v1109
        %1148 = vmatprep.subr.bf16.mxu0 0
        %1149 = vmatpush1.bf16.msra.mxu0 %v1110
        %1150 = vmatprep.subr.bf16.mxu0 0
        %1151 = vmatpush1.bf16.msra.mxu0 %v1111
        %1152 = vmatprep.subr.bf16.mxu0 0
        %1153 = vmatpush1.bf16.msra.mxu0 %v1112
        %1154 = vmatprep.subr.bf16.mxu0 0
        %1155 = vmatpush1.bf16.msra.mxu0 %v1113
        %1156 = vmatprep.subr.bf16.mxu0 0
        %1157 = vmatpush1.bf16.msra.mxu0 %v1114
        %1158 = vmatprep.subr.bf16.mxu0 0
        %1159 = vmatpush1.bf16.msra.mxu0 %v1115
        %1160 = vmatprep.subr.bf16.mxu0 0
        %1161 = vmatpush1.bf16.msra.mxu0 %v1116
        %1162 = vmatprep.subr.bf16.mxu0 0
        %1163 = vmatpush1.bf16.msra.mxu0 %v1117
        %1164 = vmatprep.subr.bf16.mxu0 0
        %1165 = vmatpush1.bf16.msra.mxu0 %v1118
        %1166 = vmatprep.subr.bf16.mxu0 0
        %1167 = vmatpush1.bf16.msra.mxu0 %v1119
        %1168 = vmatprep.mubr.bf16.mxu0 %v1001
        %1169 = vmatmul.mubr.bf16.gmra.mrb[0].mxu0 %v1000
        %v1170 = vpop.f32.mrb[0].mxu0
        %v1171 = vadd.f32 0.0, %v1170
        %v1172 = vpop.f32.mrb[0].mxu0
        %v1173 = vpop.f32.mrb[0].mxu0
        %v1174 = vadd.f32 0.0, %v1173
        %v1175 = vpop.f32.mrb[0].mxu0
        %1176 = vmatprep.mubr.bf16.mxu0 %v1003
        %1177 = vmatmul.mubr.bf16.gmra.mrb[0].mxu0 %v1002
        %v1178 = vpop.f32.mrb[0].mxu0
        %v1179 = vadd.f32 0.0, %v1178
        %v1180 = vpop.f32.mrb[0].mxu0
        %v1181 = vpop.f32.mrb[0].mxu0
        %v1182 = vadd.f32 0.0, %v1181
        %v1183 = vpop.f32.mrb[0].mxu0
        %1184 = vmatprep.mubr.bf16.mxu0 %v1005
        %1185 = vmatmul.mubr.bf16.gmra.mrb[0].mxu0 %v1004
        %v1186 = vpop.f32.mrb[0].mxu0
        %v1187 = vadd.f32 0.0, %v1186
        %v1188 = vpop.f32.mrb[0].mxu0
        %v1189 = vpop.f32.mrb[0].mxu0
        %v1190 = vadd.f32 0.0, %v1189
        %v1191 = vpop.f32.mrb[0].mxu0
        %1192 = vmatprep.mubr.bf16.mxu0 %v1007
        %1193 = vmatmul.mubr.bf16.gmra.mrb[0].mxu0 %v1006
        %v1194 = vpop.f32.mrb[0].mxu0
        %v1195 = vadd.f32 0.0, %v1194
        %v1196 = vpop.f32.mrb[0].mxu0
        %v1197 = vpop.f32.mrb[0].mxu0
        %v1198 = vadd.f32 0.0, %v1197
        %v1199 = vpop.f32.mrb[0].mxu0
        %1200 = vdwg.mxu0
        %v1201 = vtanh.pop %v1171
        %v1202 = vtanh.pop %v1174
        %v1203 = vtanh.pop %v1179
        %v1204 = vtanh.pop %v1182
        %v1205 = vtanh.pop %v1187
        %v1206 = vtanh.pop %v1190
        %v1207 = vtanh.pop %v1195
        %v1208 = vtanh.pop %v1198
        %1217 = vrot.lane.b32.xlu0 %v925, 50
        %v1218 = vpop.permute.xlu0 %1217
        %1219 = vrot.lane.b32.xlu0 %v926, 50
        %v1220 = vpop.permute.xlu0 %1219
        %1221 = vrot.lane.b32.xlu0 %v927, 50
        %v1222 = vpop.permute.xlu0 %1221
        %1223 = vrot.lane.b32.xlu0 %v928, 50
        %v1224 = vpop.permute.xlu0 %1223
        %1225 = vrot.lane.b32.xlu0 %v929, 50
        %v1226 = vpop.permute.xlu0 %1225
        %1227 = vrot.lane.b32.xlu0 %v930, 50
        %v1228 = vpop.permute.xlu0 %1227
        %1229 = vrot.lane.b32.xlu0 %v931, 50
        %v1230 = vpop.permute.xlu0 %1229
        %1231 = vrot.lane.b32.xlu0 %v932, 50
        %v1232 = vpop.permute.xlu0 %1231
        %v1241 = vsel %vm916, %v925, %v1218
        %v1242 = vsel %vm916, %v926, %v1220
        %v1243 = vsel %vm916, %v927, %v1222
        %v1244 = vsel %vm916, %v928, %v1224
        %v1245 = vsel %vm916, %v929, %v1226
        %v1246 = vsel %vm916, %v930, %v1228
        %v1247 = vsel %vm916, %v931, %v1230
        %v1248 = vsel %vm916, %v932, %v1232
        %vm1249 = vcmask 818176
        %v1250 = vsel %vm1249, %v1241, 0.0
        %v1251 = vsel %vm1249, %v1242, 0.0
        %v1252 = vsel %vm1249, %v1243, 0.0
        %v1253 = vsel %vm1249, %v1244, 0.0
        %v1254 = vsel %vm1249, %v1245, 0.0
        %v1255 = vsel %vm1249, %v1246, 0.0
        %v1256 = vsel %vm1249, %v1247, 0.0
        %v1257 = vsel %vm1249, %v1248, 0.0
        %v1258 = vadd.f32 %v1201, %v1250
        %v1259 = vadd.f32 %v1202, %v1251
        %v1260 = vadd.f32 %v1203, %v1252
        %v1261 = vadd.f32 %v1204, %v1253
        %v1262 = vadd.f32 %v1205, %v1254
        %v1263 = vadd.f32 %v1206, %v1255
        %v1264 = vadd.f32 %v1207, %v1256
        %v1265 = vadd.f32 %v1208, %v1257
        %v1266 = vld [vmem:[%s287] sm:$0xf]
        %v1267 = vld [vmem:[%s287 + $0x4] sm:$0xf]
        %v1268 = vld [vmem:[%s287 + $0x8] sm:$0xf]
        %v1269 = vld [vmem:[%s287 + $0xc] sm:$0xf]
        %v1270 = vld [vmem:[%s287 + $0x10] sm:$0xf]
        %v1271 = vld [vmem:[%s287 + $0x14] sm:$0xf]
        %v1272 = vld [vmem:[%s287 + $0x18] sm:$0xf]
        %v1273 = vld [vmem:[%s287 + $0x1c] sm:$0xf]
        %v1275 = vsel %vm300, %v1266, 0
        %1277 = vmatprep.subr.mxu0 0.0
        %1278 = vmatpush1.msra.mxu0 %v1258
        %1279 = vmatprep.subr.mxu0 0.0
        %1280 = vmatpush1.msra.mxu0 0.0
        %1281 = vmatprep.subr.mxu0 0.0
        %1282 = vmatpush1.msra.mxu0 0.0
        %1283 = vmatprep.subr.mxu0 0.0
        %1284 = vmatpush1.msra.mxu0 0.0
        %1285 = vmatprep.subr.mxu0 0.0
        %1286 = vmatpush1.msra.mxu0 0.0
        %1287 = vmatprep.subr.mxu0 0.0
        %1288 = vmatpush1.msra.mxu0 0.0
        %1289 = vmatprep.subr.mxu0 0.0
        %1290 = vmatpush1.msra.mxu0 0.0
        %1291 = vmatprep.subr.mxu0 0.0
        %1292 = vmatpush1.msra.mxu0 0.0
        %1293 = vmatprep.subr.mxu0 0.0
        %1294 = vmatpush1.msra.mxu0 0.0
        %1295 = vmatprep.subr.mxu0 0.0
        %1296 = vmatpush1.msra.mxu0 0.0
        %1297 = vmatprep.subr.mxu0 0.0
        %1298 = vmatpush1.msra.mxu0 0.0
        %1299 = vmatprep.subr.mxu0 0.0
        %1300 = vmatpush1.msra.mxu0 0.0
        %1301 = vmatprep.subr.mxu0 0.0
        %1302 = vmatpush1.msra.mxu0 0.0
        %1303 = vmatprep.subr.mxu0 0.0
        %1304 = vmatpush1.msra.mxu0 0.0
        %1305 = vmatprep.subr.mxu0 0.0
        %1306 = vmatpush1.msra.mxu0 0.0
        %1307 = vmatprep.subr.mxu0 0.0
        %1308 = vmatpush1.msra.mxu0 0.0
        %1309 = vmatprep.subr.mxu0 0.0
        %1310 = vmatpush1.msra.mxu0 0.0
        %1311 = vmatprep.subr.mxu0 0.0
        %1312 = vmatpush1.msra.mxu0 0.0
        %1313 = vmatprep.subr.mxu0 0.0
        %1314 = vmatpush1.msra.mxu0 0.0
        %1315 = vmatprep.subr.mxu0 0.0
        %1316 = vmatpush1.msra.mxu0 0.0
        %1317 = vmatprep.subr.mxu0 0.0
        %1318 = vmatpush1.msra.mxu0 0.0
        %1319 = vmatprep.subr.mxu0 0.0
        %1320 = vmatpush1.msra.mxu0 0.0
        %1321 = vmatprep.subr.mxu0 0.0
        %1322 = vmatpush1.msra.mxu0 0.0
        %1323 = vmatprep.subr.mxu0 0.0
        %1324 = vmatpush1.msra.mxu0 0.0
        %1325 = vmatprep.subr.mxu0 0.0
        %1326 = vmatpush1.msra.mxu0 0.0
        %1327 = vmatprep.subr.mxu0 0.0
        %1328 = vmatpush1.msra.mxu0 0.0
        %1329 = vmatprep.subr.mxu0 0.0
        %1330 = vmatpush1.msra.mxu0 0.0
        %1331 = vmatprep.subr.mxu0 0.0
        %1332 = vmatpush1.msra.mxu0 0.0
        %1333 = vmatprep.subr.mxu0 0.0
        %1334 = vmatpush1.msra.mxu0 0.0
        %1335 = vmatprep.subr.mxu0 0.0
        %1336 = vmatpush1.msra.mxu0 0.0
        %1337 = vmatprep.subr.mxu0 0.0
        %1338 = vmatpush1.msra.mxu0 0.0
        %1339 = vmatprep.subr.mxu0 0.0
        %1340 = vmatpush1.msra.mxu0 0.0
        %1341 = vmatprep.mubr.f32.mxu0 0.0
        %1342 = vmatmul.mubr.f32.gmra.mrb[0].mxu0 %v1275
        %v1343 = vpop.f32.mrb[0].mxu0
        %v1344 = vadd.f32 0.0, %v1343
        %v1345 = vpop.f32.mrb[0].mxu0
        %1346 = vdwg.mxu0
        %v1348 = vsel %vm300, %v1267, 0
        %1350 = vmatprep.subr.mxu0 0.0
        %1351 = vmatpush1.msra.mxu0 %v1259
        %1352 = vmatprep.subr.mxu0 0.0
        %1353 = vmatpush1.msra.mxu0 0.0
        %1354 = vmatprep.subr.mxu0 0.0
        %1355 = vmatpush1.msra.mxu0 0.0
        %1356 = vmatprep.subr.mxu0 0.0
        %1357 = vmatpush1.msra.mxu0 0.0
        %1358 = vmatprep.subr.mxu0 0.0
        %1359 = vmatpush1.msra.mxu0 0.0
        %1360 = vmatprep.subr.mxu0 0.0
        %1361 = vmatpush1.msra.mxu0 0.0
        %1362 = vmatprep.subr.mxu0 0.0
        %1363 = vmatpush1.msra.mxu0 0.0
        %1364 = vmatprep.subr.mxu0 0.0
        %1365 = vmatpush1.msra.mxu0 0.0
        %1366 = vmatprep.subr.mxu0 0.0
        %1367 = vmatpush1.msra.mxu0 0.0
        %1368 = vmatprep.subr.mxu0 0.0
        %1369 = vmatpush1.msra.mxu0 0.0
        %1370 = vmatprep.subr.mxu0 0.0
        %1371 = vmatpush1.msra.mxu0 0.0
        %1372 = vmatprep.subr.mxu0 0.0
        %1373 = vmatpush1.msra.mxu0 0.0
        %1374 = vmatprep.subr.mxu0 0.0
        %1375 = vmatpush1.msra.mxu0 0.0
        %1376 = vmatprep.subr.mxu0 0.0
        %1377 = vmatpush1.msra.mxu0 0.0
        %1378 = vmatprep.subr.mxu0 0.0
        %1379 = vmatpush1.msra.mxu0 0.0
        %1380 = vmatprep.subr.mxu0 0.0
        %1381 = vmatpush1.msra.mxu0 0.0
        %1382 = vmatprep.subr.mxu0 0.0
        %1383 = vmatpush1.msra.mxu0 0.0
        %1384 = vmatprep.subr.mxu0 0.0
        %1385 = vmatpush1.msra.mxu0 0.0
        %1386 = vmatprep.subr.mxu0 0.0
        %1387 = vmatpush1.msra.mxu0 0.0
        %1388 = vmatprep.subr.mxu0 0.0
        %1389 = vmatpush1.msra.mxu0 0.0
        %1390 = vmatprep.subr.mxu0 0.0
        %1391 = vmatpush1.msra.mxu0 0.0
        %1392 = vmatprep.subr.mxu0 0.0
        %1393 = vmatpush1.msra.mxu0 0.0
        %1394 = vmatprep.subr.mxu0 0.0
        %1395 = vmatpush1.msra.mxu0 0.0
        %1396 = vmatprep.subr.mxu0 0.0
        %1397 = vmatpush1.msra.mxu0 0.0
        %1398 = vmatprep.subr.mxu0 0.0
        %1399 = vmatpush1.msra.mxu0 0.0
        %1400 = vmatprep.subr.mxu0 0.0
        %1401 = vmatpush1.msra.mxu0 0.0
        %1402 = vmatprep.subr.mxu0 0.0
        %1403 = vmatpush1.msra.mxu0 0.0
        %1404 = vmatprep.subr.mxu0 0.0
        %1405 = vmatpush1.msra.mxu0 0.0
        %1406 = vmatprep.subr.mxu0 0.0
        %1407 = vmatpush1.msra.mxu0 0.0
        %1408 = vmatprep.subr.mxu0 0.0
        %1409 = vmatpush1.msra.mxu0 0.0
        %1410 = vmatprep.subr.mxu0 0.0
        %1411 = vmatpush1.msra.mxu0 0.0
        %1412 = vmatprep.subr.mxu0 0.0
        %1413 = vmatpush1.msra.mxu0 0.0
        %1414 = vmatprep.mubr.f32.mxu0 0.0
        %1415 = vmatmul.mubr.f32.gmra.mrb[0].mxu0 %v1348
        %v1416 = vpop.f32.mrb[0].mxu0
        %v1417 = vadd.f32 0.0, %v1416
        %v1418 = vpop.f32.mrb[0].mxu0
        %1419 = vdwg.mxu0
        %v1421 = vsel %vm300, %v1268, 0
        %1423 = vmatprep.subr.mxu0 0.0
        %1424 = vmatpush1.msra.mxu0 %v1260
        %1425 = vmatprep.subr.mxu0 0.0
        %1426 = vmatpush1.msra.mxu0 0.0
        %1427 = vmatprep.subr.mxu0 0.0
        %1428 = vmatpush1.msra.mxu0 0.0
        %1429 = vmatprep.subr.mxu0 0.0
        %1430 = vmatpush1.msra.mxu0 0.0
        %1431 = vmatprep.subr.mxu0 0.0
        %1432 = vmatpush1.msra.mxu0 0.0
        %1433 = vmatprep.subr.mxu0 0.0
        %1434 = vmatpush1.msra.mxu0 0.0
        %1435 = vmatprep.subr.mxu0 0.0
        %1436 = vmatpush1.msra.mxu0 0.0
        %1437 = vmatprep.subr.mxu0 0.0
        %1438 = vmatpush1.msra.mxu0 0.0
        %1439 = vmatprep.subr.mxu0 0.0
        %1440 = vmatpush1.msra.mxu0 0.0
        %1441 = vmatprep.subr.mxu0 0.0
        %1442 = vmatpush1.msra.mxu0 0.0
        %1443 = vmatprep.subr.mxu0 0.0
        %1444 = vmatpush1.msra.mxu0 0.0
        %1445 = vmatprep.subr.mxu0 0.0
        %1446 = vmatpush1.msra.mxu0 0.0
        %1447 = vmatprep.subr.mxu0 0.0
        %1448 = vmatpush1.msra.mxu0 0.0
        %1449 = vmatprep.subr.mxu0 0.0
        %1450 = vmatpush1.msra.mxu0 0.0
        %1451 = vmatprep.subr.mxu0 0.0
        %1452 = vmatpush1.msra.mxu0 0.0
        %1453 = vmatprep.subr.mxu0 0.0
        %1454 = vmatpush1.msra.mxu0 0.0
        %1455 = vmatprep.subr.mxu0 0.0
        %1456 = vmatpush1.msra.mxu0 0.0
        %1457 = vmatprep.subr.mxu0 0.0
        %1458 = vmatpush1.msra.mxu0 0.0
        %1459 = vmatprep.subr.mxu0 0.0
        %1460 = vmatpush1.msra.mxu0 0.0
        %1461 = vmatprep.subr.mxu0 0.0
        %1462 = vmatpush1.msra.mxu0 0.0
        %1463 = vmatprep.subr.mxu0 0.0
        %1464 = vmatpush1.msra.mxu0 0.0
        %1465 = vmatprep.subr.mxu0 0.0
        %1466 = vmatpush1.msra.mxu0 0.0
        %1467 = vmatprep.subr.mxu0 0.0
        %1468 = vmatpush1.msra.mxu0 0.0
        %1469 = vmatprep.subr.mxu0 0.0
        %1470 = vmatpush1.msra.mxu0 0.0
        %1471 = vmatprep.subr.mxu0 0.0
        %1472 = vmatpush1.msra.mxu0 0.0
        %1473 = vmatprep.subr.mxu0 0.0
        %1474 = vmatpush1.msra.mxu0 0.0
        %1475 = vmatprep.subr.mxu0 0.0
        %1476 = vmatpush1.msra.mxu0 0.0
        %1477 = vmatprep.subr.mxu0 0.0
        %1478 = vmatpush1.msra.mxu0 0.0
        %1479 = vmatprep.subr.mxu0 0.0
        %1480 = vmatpush1.msra.mxu0 0.0
        %1481 = vmatprep.subr.mxu0 0.0
        %1482 = vmatpush1.msra.mxu0 0.0
        %1483 = vmatprep.subr.mxu0 0.0
        %1484 = vmatpush1.msra.mxu0 0.0
        %1485 = vmatprep.subr.mxu0 0.0
        %1486 = vmatpush1.msra.mxu0 0.0
        %1487 = vmatprep.mubr.f32.mxu0 0.0
        %1488 = vmatmul.mubr.f32.gmra.mrb[0].mxu0 %v1421
        %v1489 = vpop.f32.mrb[0].mxu0
        %v1490 = vadd.f32 0.0, %v1489
        %v1491 = vpop.f32.mrb[0].mxu0
        %1492 = vdwg.mxu0
        %v1494 = vsel %vm300, %v1269, 0
        %1496 = vmatprep.subr.mxu0 0.0
        %1497 = vmatpush1.msra.mxu0 %v1261
        %1498 = vmatprep.subr.mxu0 0.0
        %1499 = vmatpush1.msra.mxu0 0.0
        %1500 = vmatprep.subr.mxu0 0.0
        %1501 = vmatpush1.msra.mxu0 0.0
        %1502 = vmatprep.subr.mxu0 0.0
        %1503 = vmatpush1.msra.mxu0 0.0
        %1504 = vmatprep.subr.mxu0 0.0
        %1505 = vmatpush1.msra.mxu0 0.0
        %1506 = vmatprep.subr.mxu0 0.0
        %1507 = vmatpush1.msra.mxu0 0.0
        %1508 = vmatprep.subr.mxu0 0.0
        %1509 = vmatpush1.msra.mxu0 0.0
        %1510 = vmatprep.subr.mxu0 0.0
        %1511 = vmatpush1.msra.mxu0 0.0
        %1512 = vmatprep.subr.mxu0 0.0
        %1513 = vmatpush1.msra.mxu0 0.0
        %1514 = vmatprep.subr.mxu0 0.0
        %1515 = vmatpush1.msra.mxu0 0.0
        %1516 = vmatprep.subr.mxu0 0.0
        %1517 = vmatpush1.msra.mxu0 0.0
        %1518 = vmatprep.subr.mxu0 0.0
        %1519 = vmatpush1.msra.mxu0 0.0
        %1520 = vmatprep.subr.mxu0 0.0
        %1521 = vmatpush1.msra.mxu0 0.0
        %1522 = vmatprep.subr.mxu0 0.0
        %1523 = vmatpush1.msra.mxu0 0.0
        %1524 = vmatprep.subr.mxu0 0.0
        %1525 = vmatpush1.msra.mxu0 0.0
        %1526 = vmatprep.subr.mxu0 0.0
        %1527 = vmatpush1.msra.mxu0 0.0
        %1528 = vmatprep.subr.mxu0 0.0
        %1529 = vmatpush1.msra.mxu0 0.0
        %1530 = vmatprep.subr.mxu0 0.0
        %1531 = vmatpush1.msra.mxu0 0.0
        %1532 = vmatprep.subr.mxu0 0.0
        %1533 = vmatpush1.msra.mxu0 0.0
        %1534 = vmatprep.subr.mxu0 0.0
        %1535 = vmatpush1.msra.mxu0 0.0
        %1536 = vmatprep.subr.mxu0 0.0
        %1537 = vmatpush1.msra.mxu0 0.0
        %1538 = vmatprep.subr.mxu0 0.0
        %1539 = vmatpush1.msra.mxu0 0.0
        %1540 = vmatprep.subr.mxu0 0.0
        %1541 = vmatpush1.msra.mxu0 0.0
        %1542 = vmatprep.subr.mxu0 0.0
        %1543 = vmatpush1.msra.mxu0 0.0
        %1544 = vmatprep.subr.mxu0 0.0
        %1545 = vmatpush1.msra.mxu0 0.0
        %1546 = vmatprep.subr.mxu0 0.0
        %1547 = vmatpush1.msra.mxu0 0.0
        %1548 = vmatprep.subr.mxu0 0.0
        %1549 = vmatpush1.msra.mxu0 0.0
        %1550 = vmatprep.subr.mxu0 0.0
        %1551 = vmatpush1.msra.mxu0 0.0
        %1552 = vmatprep.subr.mxu0 0.0
        %1553 = vmatpush1.msra.mxu0 0.0
        %1554 = vmatprep.subr.mxu0 0.0
        %1555 = vmatpush1.msra.mxu0 0.0
        %1556 = vmatprep.subr.mxu0 0.0
        %1557 = vmatpush1.msra.mxu0 0.0
        %1558 = vmatprep.subr.mxu0 0.0
        %1559 = vmatpush1.msra.mxu0 0.0
        %1560 = vmatprep.mubr.f32.mxu0 0.0
        %1561 = vmatmul.mubr.f32.gmra.mrb[0].mxu0 %v1494
        %v1562 = vpop.f32.mrb[0].mxu0
        %v1563 = vadd.f32 0.0, %v1562
        %v1564 = vpop.f32.mrb[0].mxu0
        %1565 = vdwg.mxu0
        %v1567 = vsel %vm300, %v1270, 0
        %1569 = vmatprep.subr.mxu0 0.0
        %1570 = vmatpush1.msra.mxu0 %v1262
        %1571 = vmatprep.subr.mxu0 0.0
        %1572 = vmatpush1.msra.mxu0 0.0
        %1573 = vmatprep.subr.mxu0 0.0
        %1574 = vmatpush1.msra.mxu0 0.0
        %1575 = vmatprep.subr.mxu0 0.0
        %1576 = vmatpush1.msra.mxu0 0.0
        %1577 = vmatprep.subr.mxu0 0.0
        %1578 = vmatpush1.msra.mxu0 0.0
        %1579 = vmatprep.subr.mxu0 0.0
        %1580 = vmatpush1.msra.mxu0 0.0
        %1581 = vmatprep.subr.mxu0 0.0
        %1582 = vmatpush1.msra.mxu0 0.0
        %1583 = vmatprep.subr.mxu0 0.0
        %1584 = vmatpush1.msra.mxu0 0.0
        %1585 = vmatprep.subr.mxu0 0.0
        %1586 = vmatpush1.msra.mxu0 0.0
        %1587 = vmatprep.subr.mxu0 0.0
        %1588 = vmatpush1.msra.mxu0 0.0
        %1589 = vmatprep.subr.mxu0 0.0
        %1590 = vmatpush1.msra.mxu0 0.0
        %1591 = vmatprep.subr.mxu0 0.0
        %1592 = vmatpush1.msra.mxu0 0.0
        %1593 = vmatprep.subr.mxu0 0.0
        %1594 = vmatpush1.msra.mxu0 0.0
        %1595 = vmatprep.subr.mxu0 0.0
        %1596 = vmatpush1.msra.mxu0 0.0
        %1597 = vmatprep.subr.mxu0 0.0
        %1598 = vmatpush1.msra.mxu0 0.0
        %1599 = vmatprep.subr.mxu0 0.0
        %1600 = vmatpush1.msra.mxu0 0.0
        %1601 = vmatprep.subr.mxu0 0.0
        %1602 = vmatpush1.msra.mxu0 0.0
        %1603 = vmatprep.subr.mxu0 0.0
        %1604 = vmatpush1.msra.mxu0 0.0
        %1605 = vmatprep.subr.mxu0 0.0
        %1606 = vmatpush1.msra.mxu0 0.0
        %1607 = vmatprep.subr.mxu0 0.0
        %1608 = vmatpush1.msra.mxu0 0.0
        %1609 = vmatprep.subr.mxu0 0.0
        %1610 = vmatpush1.msra.mxu0 0.0
        %1611 = vmatprep.subr.mxu0 0.0
        %1612 = vmatpush1.msra.mxu0 0.0
        %1613 = vmatprep.subr.mxu0 0.0
        %1614 = vmatpush1.msra.mxu0 0.0
        %1615 = vmatprep.subr.mxu0 0.0
        %1616 = vmatpush1.msra.mxu0 0.0
        %1617 = vmatprep.subr.mxu0 0.0
        %1618 = vmatpush1.msra.mxu0 0.0
        %1619 = vmatprep.subr.mxu0 0.0
        %1620 = vmatpush1.msra.mxu0 0.0
        %1621 = vmatprep.subr.mxu0 0.0
        %1622 = vmatpush1.msra.mxu0 0.0
        %1623 = vmatprep.subr.mxu0 0.0
        %1624 = vmatpush1.msra.mxu0 0.0
        %1625 = vmatprep.subr.mxu0 0.0
        %1626 = vmatpush1.msra.mxu0 0.0
        %1627 = vmatprep.subr.mxu0 0.0
        %1628 = vmatpush1.msra.mxu0 0.0
        %1629 = vmatprep.subr.mxu0 0.0
        %1630 = vmatpush1.msra.mxu0 0.0
        %1631 = vmatprep.subr.mxu0 0.0
        %1632 = vmatpush1.msra.mxu0 0.0
        %1633 = vmatprep.mubr.f32.mxu0 0.0
        %1634 = vmatmul.mubr.f32.gmra.mrb[0].mxu0 %v1567
        %v1635 = vpop.f32.mrb[0].mxu0
        %v1636 = vadd.f32 0.0, %v1635
        %v1637 = vpop.f32.mrb[0].mxu0
        %1638 = vdwg.mxu0
        %v1640 = vsel %vm300, %v1271, 0
        %1642 = vmatprep.subr.mxu0 0.0
        %1643 = vmatpush1.msra.mxu0 %v1263
        %1644 = vmatprep.subr.mxu0 0.0
        %1645 = vmatpush1.msra.mxu0 0.0
        %1646 = vmatprep.subr.mxu0 0.0
        %1647 = vmatpush1.msra.mxu0 0.0
        %1648 = vmatprep.subr.mxu0 0.0
        %1649 = vmatpush1.msra.mxu0 0.0
        %1650 = vmatprep.subr.mxu0 0.0
        %1651 = vmatpush1.msra.mxu0 0.0
        %1652 = vmatprep.subr.mxu0 0.0
        %1653 = vmatpush1.msra.mxu0 0.0
        %1654 = vmatprep.subr.mxu0 0.0
        %1655 = vmatpush1.msra.mxu0 0.0
        %1656 = vmatprep.subr.mxu0 0.0
        %1657 = vmatpush1.msra.mxu0 0.0
        %1658 = vmatprep.subr.mxu0 0.0
        %1659 = vmatpush1.msra.mxu0 0.0
        %1660 = vmatprep.subr.mxu0 0.0
        %1661 = vmatpush1.msra.mxu0 0.0
        %1662 = vmatprep.subr.mxu0 0.0
        %1663 = vmatpush1.msra.mxu0 0.0
        %1664 = vmatprep.subr.mxu0 0.0
        %1665 = vmatpush1.msra.mxu0 0.0
        %1666 = vmatprep.subr.mxu0 0.0
        %1667 = vmatpush1.msra.mxu0 0.0
        %1668 = vmatprep.subr.mxu0 0.0
        %1669 = vmatpush1.msra.mxu0 0.0
        %1670 = vmatprep.subr.mxu0 0.0
        %1671 = vmatpush1.msra.mxu0 0.0
        %1672 = vmatprep.subr.mxu0 0.0
        %1673 = vmatpush1.msra.mxu0 0.0
        %1674 = vmatprep.subr.mxu0 0.0
        %1675 = vmatpush1.msra.mxu0 0.0
        %1676 = vmatprep.subr.mxu0 0.0
        %1677 = vmatpush1.msra.mxu0 0.0
        %1678 = vmatprep.subr.mxu0 0.0
        %1679 = vmatpush1.msra.mxu0 0.0
        %1680 = vmatprep.subr.mxu0 0.0
        %1681 = vmatpush1.msra.mxu0 0.0
        %1682 = vmatprep.subr.mxu0 0.0
        %1683 = vmatpush1.msra.mxu0 0.0
        %1684 = vmatprep.subr.mxu0 0.0
        %1685 = vmatpush1.msra.mxu0 0.0
        %1686 = vmatprep.subr.mxu0 0.0
        %1687 = vmatpush1.msra.mxu0 0.0
        %1688 = vmatprep.subr.mxu0 0.0
        %1689 = vmatpush1.msra.mxu0 0.0
        %1690 = vmatprep.subr.mxu0 0.0
        %1691 = vmatpush1.msra.mxu0 0.0
        %1692 = vmatprep.subr.mxu0 0.0
        %1693 = vmatpush1.msra.mxu0 0.0
        %1694 = vmatprep.subr.mxu0 0.0
        %1695 = vmatpush1.msra.mxu0 0.0
        %1696 = vmatprep.subr.mxu0 0.0
        %1697 = vmatpush1.msra.mxu0 0.0
        %1698 = vmatprep.subr.mxu0 0.0
        %1699 = vmatpush1.msra.mxu0 0.0
        %1700 = vmatprep.subr.mxu0 0.0
        %1701 = vmatpush1.msra.mxu0 0.0
        %1702 = vmatprep.subr.mxu0 0.0
        %1703 = vmatpush1.msra.mxu0 0.0
        %1704 = vmatprep.subr.mxu0 0.0
        %1705 = vmatpush1.msra.mxu0 0.0
        %1706 = vmatprep.mubr.f32.mxu0 0.0
        %1707 = vmatmul.mubr.f32.gmra.mrb[0].mxu0 %v1640
        %v1708 = vpop.f32.mrb[0].mxu0
        %v1709 = vadd.f32 0.0, %v1708
        %v1710 = vpop.f32.mrb[0].mxu0
        %1711 = vdwg.mxu0
        %v1713 = vsel %vm300, %v1272, 0
        %1715 = vmatprep.subr.mxu0 0.0
        %1716 = vmatpush1.msra.mxu0 %v1264
        %1717 = vmatprep.subr.mxu0 0.0
        %1718 = vmatpush1.msra.mxu0 0.0
        %1719 = vmatprep.subr.mxu0 0.0
        %1720 = vmatpush1.msra.mxu0 0.0
        %1721 = vmatprep.subr.mxu0 0.0
        %1722 = vmatpush1.msra.mxu0 0.0
        %1723 = vmatprep.subr.mxu0 0.0
        %1724 = vmatpush1.msra.mxu0 0.0
        %1725 = vmatprep.subr.mxu0 0.0
        %1726 = vmatpush1.msra.mxu0 0.0
        %1727 = vmatprep.subr.mxu0 0.0
        %1728 = vmatpush1.msra.mxu0 0.0
        %1729 = vmatprep.subr.mxu0 0.0
        %1730 = vmatpush1.msra.mxu0 0.0
        %1731 = vmatprep.subr.mxu0 0.0
        %1732 = vmatpush1.msra.mxu0 0.0
        %1733 = vmatprep.subr.mxu0 0.0
        %1734 = vmatpush1.msra.mxu0 0.0
        %1735 = vmatprep.subr.mxu0 0.0
        %1736 = vmatpush1.msra.mxu0 0.0
        %1737 = vmatprep.subr.mxu0 0.0
        %1738 = vmatpush1.msra.mxu0 0.0
        %1739 = vmatprep.subr.mxu0 0.0
        %1740 = vmatpush1.msra.mxu0 0.0
        %1741 = vmatprep.subr.mxu0 0.0
        %1742 = vmatpush1.msra.mxu0 0.0
        %1743 = vmatprep.subr.mxu0 0.0
        %1744 = vmatpush1.msra.mxu0 0.0
        %1745 = vmatprep.subr.mxu0 0.0
        %1746 = vmatpush1.msra.mxu0 0.0
        %1747 = vmatprep.subr.mxu0 0.0
        %1748 = vmatpush1.msra.mxu0 0.0
        %1749 = vmatprep.subr.mxu0 0.0
        %1750 = vmatpush1.msra.mxu0 0.0
        %1751 = vmatprep.subr.mxu0 0.0
        %1752 = vmatpush1.msra.mxu0 0.0
        %1753 = vmatprep.subr.mxu0 0.0
        %1754 = vmatpush1.msra.mxu0 0.0
        %1755 = vmatprep.subr.mxu0 0.0
        %1756 = vmatpush1.msra.mxu0 0.0
        %1757 = vmatprep.subr.mxu0 0.0
        %1758 = vmatpush1.msra.mxu0 0.0
        %1759 = vmatprep.subr.mxu0 0.0
        %1760 = vmatpush1.msra.mxu0 0.0
        %1761 = vmatprep.subr.mxu0 0.0
        %1762 = vmatpush1.msra.mxu0 0.0
        %1763 = vmatprep.subr.mxu0 0.0
        %1764 = vmatpush1.msra.mxu0 0.0
        %1765 = vmatprep.subr.mxu0 0.0
        %1766 = vmatpush1.msra.mxu0 0.0
        %1767 = vmatprep.subr.mxu0 0.0
        %1768 = vmatpush1.msra.mxu0 0.0
        %1769 = vmatprep.subr.mxu0 0.0
        %1770 = vmatpush1.msra.mxu0 0.0
        %1771 = vmatprep.subr.mxu0 0.0
        %1772 = vmatpush1.msra.mxu0 0.0
        %1773 = vmatprep.subr.mxu0 0.0
        %1774 = vmatpush1.msra.mxu0 0.0
        %1775 = vmatprep.subr.mxu0 0.0
        %1776 = vmatpush1.msra.mxu0 0.0
        %1777 = vmatprep.subr.mxu0 0.0
        %1778 = vmatpush1.msra.mxu0 0.0
        %1779 = vmatprep.mubr.f32.mxu0 0.0
        %1780 = vmatmul.mubr.f32.gmra.mrb[0].mxu0 %v1713
        %v1781 = vpop.f32.mrb[0].mxu0
        %v1782 = vadd.f32 0.0, %v1781
        %v1783 = vpop.f32.mrb[0].mxu0
        %1784 = vdwg.mxu0
        %v1786 = vsel %vm300, %v1273, 0
        %1788 = vmatprep.subr.mxu0 0.0
        %1789 = vmatpush1.msra.mxu0 %v1265
        %1790 = vmatprep.subr.mxu0 0.0
        %1791 = vmatpush1.msra.mxu0 0.0
        %1792 = vmatprep.subr.mxu0 0.0
        %1793 = vmatpush1.msra.mxu0 0.0
        %1794 = vmatprep.subr.mxu0 0.0
        %1795 = vmatpush1.msra.mxu0 0.0
        %1796 = vmatprep.subr.mxu0 0.0
        %1797 = vmatpush1.msra.mxu0 0.0
        %1798 = vmatprep.subr.mxu0 0.0
        %1799 = vmatpush1.msra.mxu0 0.0
        %1800 = vmatprep.subr.mxu0 0.0
        %1801 = vmatpush1.msra.mxu0 0.0
        %1802 = vmatprep.subr.mxu0 0.0
        %1803 = vmatpush1.msra.mxu0 0.0
        %1804 = vmatprep.subr.mxu0 0.0
        %1805 = vmatpush1.msra.mxu0 0.0
        %1806 = vmatprep.subr.mxu0 0.0
        %1807 = vmatpush1.msra.mxu0 0.0
        %1808 = vmatprep.subr.mxu0 0.0
        %1809 = vmatpush1.msra.mxu0 0.0
        %1810 = vmatprep.subr.mxu0 0.0
        %1811 = vmatpush1.msra.mxu0 0.0
        %1812 = vmatprep.subr.mxu0 0.0
        %1813 = vmatpush1.msra.mxu0 0.0
        %1814 = vmatprep.subr.mxu0 0.0
        %1815 = vmatpush1.msra.mxu0 0.0
        %1816 = vmatprep.subr.mxu0 0.0
        %1817 = vmatpush1.msra.mxu0 0.0
        %1818 = vmatprep.subr.mxu0 0.0
        %1819 = vmatpush1.msra.mxu0 0.0
        %1820 = vmatprep.subr.mxu0 0.0
        %1821 = vmatpush1.msra.mxu0 0.0
        %1822 = vmatprep.subr.mxu0 0.0
        %1823 = vmatpush1.msra.mxu0 0.0
        %1824 = vmatprep.subr.mxu0 0.0
        %1825 = vmatpush1.msra.mxu0 0.0
        %1826 = vmatprep.subr.mxu0 0.0
        %1827 = vmatpush1.msra.mxu0 0.0
        %1828 = vmatprep.subr.mxu0 0.0
        %1829 = vmatpush1.msra.mxu0 0.0
        %1830 = vmatprep.subr.mxu0 0.0
        %1831 = vmatpush1.msra.mxu0 0.0
        %1832 = vmatprep.subr.mxu0 0.0
        %1833 = vmatpush1.msra.mxu0 0.0
        %1834 = vmatprep.subr.mxu0 0.0
        %1835 = vmatpush1.msra.mxu0 0.0
        %1836 = vmatprep.subr.mxu0 0.0
        %1837 = vmatpush1.msra.mxu0 0.0
        %1838 = vmatprep.subr.mxu0 0.0
        %1839 = vmatpush1.msra.mxu0 0.0
        %1840 = vmatprep.subr.mxu0 0.0
        %1841 = vmatpush1.msra.mxu0 0.0
        %1842 = vmatprep.subr.mxu0 0.0
        %1843 = vmatpush1.msra.mxu0 0.0
        %1844 = vmatprep.subr.mxu0 0.0
        %1845 = vmatpush1.msra.mxu0 0.0
        %1846 = vmatprep.subr.mxu0 0.0
        %1847 = vmatpush1.msra.mxu0 0.0
        %1848 = vmatprep.subr.mxu0 0.0
        %1849 = vmatpush1.msra.mxu0 0.0
        %1850 = vmatprep.subr.mxu0 0.0
        %1851 = vmatpush1.msra.mxu0 0.0
        %1852 = vmatprep.mubr.f32.mxu0 0.0
        %1853 = vmatmul.mubr.f32.gmra.mrb[0].mxu0 %v1786
        %v1854 = vpop.f32.mrb[0].mxu0
        %v1855 = vadd.f32 0.0, %v1854
        %v1856 = vpop.f32.mrb[0].mxu0
        %1857 = vdwg.mxu0
        %1858 = vxpose.xlu0.b32.start [1/16] %v1344, 128
        %1859 = vxpose.xlu0.b32.cont [2/16] 0.0, 128
        %1860 = vxpose.xlu0.b32.cont [3/16] 0.0, 128
        %1861 = vxpose.xlu0.b32.cont [4/16] 0.0, 128
        %1862 = vxpose.xlu0.b32.cont [5/16] 0.0, 128
        %1863 = vxpose.xlu0.b32.cont [6/16] 0.0, 128
        %1864 = vxpose.xlu0.b32.cont [7/16] 0.0, 128
        %1865 = vxpose.xlu0.b32.cont [8/16] 0.0, 128
        %1866 = vxpose.xlu0.b32.cont [9/16] 0.0, 128
        %1867 = vxpose.xlu0.b32.cont [10/16] 0.0, 128
        %1868 = vxpose.xlu0.b32.cont [11/16] 0.0, 128
        %1869 = vxpose.xlu0.b32.cont [12/16] 0.0, 128
        %1870 = vxpose.xlu0.b32.cont [13/16] 0.0, 128
        %1871 = vxpose.xlu0.b32.cont [14/16] 0.0, 128
        %1872 = vxpose.xlu0.b32.cont [15/16] 0.0, 128
        %1873 = vxpose.xlu0.b32.end [16/16] 0.0, 128
        %v1874 = vpop.trf.xlu0
        %v1875 = vpop.trf.xlu0
        %v1876 = vpop.trf.xlu0
        %v1877 = vpop.trf.xlu0
        %v1878 = vpop.trf.xlu0
        %v1879 = vpop.trf.xlu0
        %v1880 = vpop.trf.xlu0
        %v1881 = vpop.trf.xlu0
        %v1882 = vpop.trf.xlu0
        %v1883 = vpop.trf.xlu0
        %v1884 = vpop.trf.xlu0
        %v1885 = vpop.trf.xlu0
        %v1886 = vpop.trf.xlu0
        %v1887 = vpop.trf.xlu0
        %v1888 = vpop.trf.xlu0
        %v1889 = vpop.trf.xlu0
        %vm1890 = vcmask 31744
        %v1892 = vsel %vm1890, %v1874, 0
        %vm1894 = vcmask 1043456
        %v1896 = vsel %vm1894, %v1344, 0
        %1898 = vmatprep.subr.mxu0 0.0
        %1899 = vmatpush1.msra.mxu0 %v1896
        %1900 = vmatprep.subr.mxu0 0.0
        %1901 = vmatpush1.msra.mxu0 0.0
        %1902 = vmatprep.subr.mxu0 0.0
        %1903 = vmatpush1.msra.mxu0 0.0
        %1904 = vmatprep.subr.mxu0 0.0
        %1905 = vmatpush1.msra.mxu0 0.0
        %1906 = vmatprep.subr.mxu0 0.0
        %1907 = vmatpush1.msra.mxu0 0.0
        %1908 = vmatprep.subr.mxu0 0.0
        %1909 = vmatpush1.msra.mxu0 0.0
        %1910 = vmatprep.subr.mxu0 0.0
        %1911 = vmatpush1.msra.mxu0 0.0
        %1912 = vmatprep.subr.mxu0 0.0
        %1913 = vmatpush1.msra.mxu0 0.0
        %1914 = vmatprep.subr.mxu0 0.0
        %1915 = vmatpush1.msra.mxu0 0.0
        %1916 = vmatprep.subr.mxu0 0.0
        %1917 = vmatpush1.msra.mxu0 0.0
        %1918 = vmatprep.subr.mxu0 0.0
        %1919 = vmatpush1.msra.mxu0 0.0
        %1920 = vmatprep.subr.mxu0 0.0
        %1921 = vmatpush1.msra.mxu0 0.0
        %1922 = vmatprep.subr.mxu0 0.0
        %1923 = vmatpush1.msra.mxu0 0.0
        %1924 = vmatprep.subr.mxu0 0.0
        %1925 = vmatpush1.msra.mxu0 0.0
        %1926 = vmatprep.subr.mxu0 0.0
        %1927 = vmatpush1.msra.mxu0 0.0
        %1928 = vmatprep.subr.mxu0 0.0
        %1929 = vmatpush1.msra.mxu0 0.0
        %1930 = vmatprep.subr.mxu0 0.0
        %1931 = vmatpush1.msra.mxu0 0.0
        %1932 = vmatprep.subr.mxu0 0.0
        %1933 = vmatpush1.msra.mxu0 0.0
        %1934 = vmatprep.subr.mxu0 0.0
        %1935 = vmatpush1.msra.mxu0 0.0
        %1936 = vmatprep.subr.mxu0 0.0
        %1937 = vmatpush1.msra.mxu0 0.0
        %1938 = vmatprep.subr.mxu0 0.0
        %1939 = vmatpush1.msra.mxu0 0.0
        %1940 = vmatprep.subr.mxu0 0.0
        %1941 = vmatpush1.msra.mxu0 0.0
        %1942 = vmatprep.subr.mxu0 0.0
        %1943 = vmatpush1.msra.mxu0 0.0
        %1944 = vmatprep.subr.mxu0 0.0
        %1945 = vmatpush1.msra.mxu0 0.0
        %1946 = vmatprep.subr.mxu0 0.0
        %1947 = vmatpush1.msra.mxu0 0.0
        %1948 = vmatprep.subr.mxu0 0.0
        %1949 = vmatpush1.msra.mxu0 0.0
        %1950 = vmatprep.subr.mxu0 0.0
        %1951 = vmatpush1.msra.mxu0 0.0
        %1952 = vmatprep.subr.mxu0 0.0
        %1953 = vmatpush1.msra.mxu0 0.0
        %1954 = vmatprep.subr.mxu0 0.0
        %1955 = vmatpush1.msra.mxu0 0.0
        %1956 = vmatprep.subr.mxu0 0.0
        %1957 = vmatpush1.msra.mxu0 0.0
        %1958 = vmatprep.subr.mxu0 0.0
        %1959 = vmatpush1.msra.mxu0 0.0
        %1960 = vmatprep.subr.mxu0 0.0
        %1961 = vmatpush1.msra.mxu0 0.0
        %1962 = vmatprep.mubr.f32.mxu0 0.0
        %1963 = vmatmul.mubr.f32.gmra.mrb[0].mxu0 %v1892
        %v1964 = vpop.f32.mrb[0].mxu0
        %v1965 = vadd.f32 0.0, %v1964
        %v1966 = vpop.f32.mrb[0].mxu0
        %1967 = vdwg.mxu0
        %1968 = vxpose.xlu0.b32.start [1/16] %v1417, 128
        %1969 = vxpose.xlu0.b32.cont [2/16] 0.0, 128
        %1970 = vxpose.xlu0.b32.cont [3/16] 0.0, 128
        %1971 = vxpose.xlu0.b32.cont [4/16] 0.0, 128
        %1972 = vxpose.xlu0.b32.cont [5/16] 0.0, 128
        %1973 = vxpose.xlu0.b32.cont [6/16] 0.0, 128
        %1974 = vxpose.xlu0.b32.cont [7/16] 0.0, 128
        %1975 = vxpose.xlu0.b32.cont [8/16] 0.0, 128
        %1976 = vxpose.xlu0.b32.cont [9/16] 0.0, 128
        %1977 = vxpose.xlu0.b32.cont [10/16] 0.0, 128
        %1978 = vxpose.xlu0.b32.cont [11/16] 0.0, 128
        %1979 = vxpose.xlu0.b32.cont [12/16] 0.0, 128
        %1980 = vxpose.xlu0.b32.cont [13/16] 0.0, 128
        %1981 = vxpose.xlu0.b32.cont [14/16] 0.0, 128
        %1982 = vxpose.xlu0.b32.cont [15/16] 0.0, 128
        %1983 = vxpose.xlu0.b32.end [16/16] 0.0, 128
        %v1984 = vpop.trf.xlu0
        %v1985 = vpop.trf.xlu0
        %v1986 = vpop.trf.xlu0
        %v1987 = vpop.trf.xlu0
        %v1988 = vpop.trf.xlu0
        %v1989 = vpop.trf.xlu0
        %v1990 = vpop.trf.xlu0
        %v1991 = vpop.trf.xlu0
        %v1992 = vpop.trf.xlu0
        %v1993 = vpop.trf.xlu0
        %v1994 = vpop.trf.xlu0
        %v1995 = vpop.trf.xlu0
        %v1996 = vpop.trf.xlu0
        %v1997 = vpop.trf.xlu0
        %v1998 = vpop.trf.xlu0
        %v1999 = vpop.trf.xlu0
        %v2001 = vsel %vm1890, %v1984, 0
        %v2004 = vsel %vm1894, %v1417, 0
        %2006 = vmatprep.subr.mxu0 0.0
        %2007 = vmatpush1.msra.mxu0 %v2004
        %2008 = vmatprep.subr.mxu0 0.0
        %2009 = vmatpush1.msra.mxu0 0.0
        %2010 = vmatprep.subr.mxu0 0.0
        %2011 = vmatpush1.msra.mxu0 0.0
        %2012 = vmatprep.subr.mxu0 0.0
        %2013 = vmatpush1.msra.mxu0 0.0
        %2014 = vmatprep.subr.mxu0 0.0
        %2015 = vmatpush1.msra.mxu0 0.0
        %2016 = vmatprep.subr.mxu0 0.0
        %2017 = vmatpush1.msra.mxu0 0.0
        %2018 = vmatprep.subr.mxu0 0.0
        %2019 = vmatpush1.msra.mxu0 0.0
        %2020 = vmatprep.subr.mxu0 0.0
        %2021 = vmatpush1.msra.mxu0 0.0
        %2022 = vmatprep.subr.mxu0 0.0
        %2023 = vmatpush1.msra.mxu0 0.0
        %2024 = vmatprep.subr.mxu0 0.0
        %2025 = vmatpush1.msra.mxu0 0.0
        %2026 = vmatprep.subr.mxu0 0.0
        %2027 = vmatpush1.msra.mxu0 0.0
        %2028 = vmatprep.subr.mxu0 0.0
        %2029 = vmatpush1.msra.mxu0 0.0
        %2030 = vmatprep.subr.mxu0 0.0
        %2031 = vmatpush1.msra.mxu0 0.0
        %2032 = vmatprep.subr.mxu0 0.0
        %2033 = vmatpush1.msra.mxu0 0.0
        %2034 = vmatprep.subr.mxu0 0.0
        %2035 = vmatpush1.msra.mxu0 0.0
        %2036 = vmatprep.subr.mxu0 0.0
        %2037 = vmatpush1.msra.mxu0 0.0
        %2038 = vmatprep.subr.mxu0 0.0
        %2039 = vmatpush1.msra.mxu0 0.0
        %2040 = vmatprep.subr.mxu0 0.0
        %2041 = vmatpush1.msra.mxu0 0.0
        %2042 = vmatprep.subr.mxu0 0.0
        %2043 = vmatpush1.msra.mxu0 0.0
        %2044 = vmatprep.subr.mxu0 0.0
        %2045 = vmatpush1.msra.mxu0 0.0
        %2046 = vmatprep.subr.mxu0 0.0
        %2047 = vmatpush1.msra.mxu0 0.0
        %2048 = vmatprep.subr.mxu0 0.0
        %2049 = vmatpush1.msra.mxu0 0.0
        %2050 = vmatprep.subr.mxu0 0.0
        %2051 = vmatpush1.msra.mxu0 0.0
        %2052 = vmatprep.subr.mxu0 0.0
        %2053 = vmatpush1.msra.mxu0 0.0
        %2054 = vmatprep.subr.mxu0 0.0
        %2055 = vmatpush1.msra.mxu0 0.0
        %2056 = vmatprep.subr.mxu0 0.0
        %2057 = vmatpush1.msra.mxu0 0.0
        %2058 = vmatprep.subr.mxu0 0.0
        %2059 = vmatpush1.msra.mxu0 0.0
        %2060 = vmatprep.subr.mxu0 0.0
        %2061 = vmatpush1.msra.mxu0 0.0
        %2062 = vmatprep.subr.mxu0 0.0
        %2063 = vmatpush1.msra.mxu0 0.0
        %2064 = vmatprep.subr.mxu0 0.0
        %2065 = vmatpush1.msra.mxu0 0.0
        %2066 = vmatprep.subr.mxu0 0.0
        %2067 = vmatpush1.msra.mxu0 0.0
        %2068 = vmatprep.subr.mxu0 0.0
        %2069 = vmatpush1.msra.mxu0 0.0
        %2070 = vmatprep.mubr.f32.mxu0 0.0
        %2071 = vmatmul.mubr.f32.gmra.mrb[0].mxu0 %v2001
        %v2072 = vpop.f32.mrb[0].mxu0
        %v2073 = vadd.f32 0.0, %v2072
        %v2074 = vpop.f32.mrb[0].mxu0
        %2075 = vdwg.mxu0
        %2076 = vxpose.xlu0.b32.start [1/16] %v1490, 128
        %2077 = vxpose.xlu0.b32.cont [2/16] 0.0, 128
        %2078 = vxpose.xlu0.b32.cont [3/16] 0.0, 128
        %2079 = vxpose.xlu0.b32.cont [4/16] 0.0, 128
        %2080 = vxpose.xlu0.b32.cont [5/16] 0.0, 128
        %2081 = vxpose.xlu0.b32.cont [6/16] 0.0, 128
        %2082 = vxpose.xlu0.b32.cont [7/16] 0.0, 128
        %2083 = vxpose.xlu0.b32.cont [8/16] 0.0, 128
        %2084 = vxpose.xlu0.b32.cont [9/16] 0.0, 128
        %2085 = vxpose.xlu0.b32.cont [10/16] 0.0, 128
        %2086 = vxpose.xlu0.b32.cont [11/16] 0.0, 128
        %2087 = vxpose.xlu0.b32.cont [12/16] 0.0, 128
        %2088 = vxpose.xlu0.b32.cont [13/16] 0.0, 128
        %2089 = vxpose.xlu0.b32.cont [14/16] 0.0, 128
        %2090 = vxpose.xlu0.b32.cont [15/16] 0.0, 128
        %2091 = vxpose.xlu0.b32.end [16/16] 0.0, 128
        %v2092 = vpop.trf.xlu0
        %v2093 = vpop.trf.xlu0
        %v2094 = vpop.trf.xlu0
        %v2095 = vpop.trf.xlu0
        %v2096 = vpop.trf.xlu0
        %v2097 = vpop.trf.xlu0
        %v2098 = vpop.trf.xlu0
        %v2099 = vpop.trf.xlu0
        %v2100 = vpop.trf.xlu0
        %v2101 = vpop.trf.xlu0
        %v2102 = vpop.trf.xlu0
        %v2103 = vpop.trf.xlu0
        %v2104 = vpop.trf.xlu0
        %v2105 = vpop.trf.xlu0
        %v2106 = vpop.trf.xlu0
        %v2107 = vpop.trf.xlu0
        %v2109 = vsel %vm1890, %v2092, 0
        %v2112 = vsel %vm1894, %v1490, 0
        %2114 = vmatprep.subr.mxu0 0.0
        %2115 = vmatpush1.msra.mxu0 %v2112
        %2116 = vmatprep.subr.mxu0 0.0
        %2117 = vmatpush1.msra.mxu0 0.0
        %2118 = vmatprep.subr.mxu0 0.0
        %2119 = vmatpush1.msra.mxu0 0.0
        %2120 = vmatprep.subr.mxu0 0.0
        %2121 = vmatpush1.msra.mxu0 0.0
        %2122 = vmatprep.subr.mxu0 0.0
        %2123 = vmatpush1.msra.mxu0 0.0
        %2124 = vmatprep.subr.mxu0 0.0
        %2125 = vmatpush1.msra.mxu0 0.0
        %2126 = vmatprep.subr.mxu0 0.0
        %2127 = vmatpush1.msra.mxu0 0.0
        %2128 = vmatprep.subr.mxu0 0.0
        %2129 = vmatpush1.msra.mxu0 0.0
        %2130 = vmatprep.subr.mxu0 0.0
        %2131 = vmatpush1.msra.mxu0 0.0
        %2132 = vmatprep.subr.mxu0 0.0
        %2133 = vmatpush1.msra.mxu0 0.0
        %2134 = vmatprep.subr.mxu0 0.0
        %2135 = vmatpush1.msra.mxu0 0.0
        %2136 = vmatprep.subr.mxu0 0.0
        %2137 = vmatpush1.msra.mxu0 0.0
        %2138 = vmatprep.subr.mxu0 0.0
        %2139 = vmatpush1.msra.mxu0 0.0
        %2140 = vmatprep.subr.mxu0 0.0
        %2141 = vmatpush1.msra.mxu0 0.0
        %2142 = vmatprep.subr.mxu0 0.0
        %2143 = vmatpush1.msra.mxu0 0.0
        %2144 = vmatprep.subr.mxu0 0.0
        %2145 = vmatpush1.msra.mxu0 0.0
        %2146 = vmatprep.subr.mxu0 0.0
        %2147 = vmatpush1.msra.mxu0 0.0
        %2148 = vmatprep.subr.mxu0 0.0
        %2149 = vmatpush1.msra.mxu0 0.0
        %2150 = vmatprep.subr.mxu0 0.0
        %2151 = vmatpush1.msra.mxu0 0.0
        %2152 = vmatprep.subr.mxu0 0.0
        %2153 = vmatpush1.msra.mxu0 0.0
        %2154 = vmatprep.subr.mxu0 0.0
        %2155 = vmatpush1.msra.mxu0 0.0
        %2156 = vmatprep.subr.mxu0 0.0
        %2157 = vmatpush1.msra.mxu0 0.0
        %2158 = vmatprep.subr.mxu0 0.0
        %2159 = vmatpush1.msra.mxu0 0.0
        %2160 = vmatprep.subr.mxu0 0.0
        %2161 = vmatpush1.msra.mxu0 0.0
        %2162 = vmatprep.subr.mxu0 0.0
        %2163 = vmatpush1.msra.mxu0 0.0
        %2164 = vmatprep.subr.mxu0 0.0
        %2165 = vmatpush1.msra.mxu0 0.0
        %2166 = vmatprep.subr.mxu0 0.0
        %2167 = vmatpush1.msra.mxu0 0.0
        %2168 = vmatprep.subr.mxu0 0.0
        %2169 = vmatpush1.msra.mxu0 0.0
        %2170 = vmatprep.subr.mxu0 0.0
        %2171 = vmatpush1.msra.mxu0 0.0
        %2172 = vmatprep.subr.mxu0 0.0
        %2173 = vmatpush1.msra.mxu0 0.0
        %2174 = vmatprep.subr.mxu0 0.0
        %2175 = vmatpush1.msra.mxu0 0.0
        %2176 = vmatprep.subr.mxu0 0.0
        %2177 = vmatpush1.msra.mxu0 0.0
        %2178 = vmatprep.mubr.f32.mxu0 0.0
        %2179 = vmatmul.mubr.f32.gmra.mrb[0].mxu0 %v2109
        %v2180 = vpop.f32.mrb[0].mxu0
        %v2181 = vadd.f32 0.0, %v2180
        %v2182 = vpop.f32.mrb[0].mxu0
        %2183 = vdwg.mxu0
        %2184 = vxpose.xlu0.b32.start [1/16] %v1563, 128
        %2185 = vxpose.xlu0.b32.cont [2/16] 0.0, 128
        %2186 = vxpose.xlu0.b32.cont [3/16] 0.0, 128
        %2187 = vxpose.xlu0.b32.cont [4/16] 0.0, 128
        %2188 = vxpose.xlu0.b32.cont [5/16] 0.0, 128
        %2189 = vxpose.xlu0.b32.cont [6/16] 0.0, 128
        %2190 = vxpose.xlu0.b32.cont [7/16] 0.0, 128
        %2191 = vxpose.xlu0.b32.cont [8/16] 0.0, 128
        %2192 = vxpose.xlu0.b32.cont [9/16] 0.0, 128
        %2193 = vxpose.xlu0.b32.cont [10/16] 0.0, 128
        %2194 = vxpose.xlu0.b32.cont [11/16] 0.0, 128
        %2195 = vxpose.xlu0.b32.cont [12/16] 0.0, 128
        %2196 = vxpose.xlu0.b32.cont [13/16] 0.0, 128
        %2197 = vxpose.xlu0.b32.cont [14/16] 0.0, 128
        %2198 = vxpose.xlu0.b32.cont [15/16] 0.0, 128
        %2199 = vxpose.xlu0.b32.end [16/16] 0.0, 128
        %v2200 = vpop.trf.xlu0
        %v2201 = vpop.trf.xlu0
        %v2202 = vpop.trf.xlu0
        %v2203 = vpop.trf.xlu0
        %v2204 = vpop.trf.xlu0
        %v2205 = vpop.trf.xlu0
        %v2206 = vpop.trf.xlu0
        %v2207 = vpop.trf.xlu0
        %v2208 = vpop.trf.xlu0
        %v2209 = vpop.trf.xlu0
        %v2210 = vpop.trf.xlu0
        %v2211 = vpop.trf.xlu0
        %v2212 = vpop.trf.xlu0
        %v2213 = vpop.trf.xlu0
        %v2214 = vpop.trf.xlu0
        %v2215 = vpop.trf.xlu0
        %v2217 = vsel %vm1890, %v2200, 0
        %v2220 = vsel %vm1894, %v1563, 0
        %2222 = vmatprep.subr.mxu0 0.0
        %2223 = vmatpush1.msra.mxu0 %v2220
        %2224 = vmatprep.subr.mxu0 0.0
        %2225 = vmatpush1.msra.mxu0 0.0
        %2226 = vmatprep.subr.mxu0 0.0
        %2227 = vmatpush1.msra.mxu0 0.0
        %2228 = vmatprep.subr.mxu0 0.0
        %2229 = vmatpush1.msra.mxu0 0.0
        %2230 = vmatprep.subr.mxu0 0.0
        %2231 = vmatpush1.msra.mxu0 0.0
        %2232 = vmatprep.subr.mxu0 0.0
        %2233 = vmatpush1.msra.mxu0 0.0
        %2234 = vmatprep.subr.mxu0 0.0
        %2235 = vmatpush1.msra.mxu0 0.0
        %2236 = vmatprep.subr.mxu0 0.0
        %2237 = vmatpush1.msra.mxu0 0.0
        %2238 = vmatprep.subr.mxu0 0.0
        %2239 = vmatpush1.msra.mxu0 0.0
        %2240 = vmatprep.subr.mxu0 0.0
        %2241 = vmatpush1.msra.mxu0 0.0
        %2242 = vmatprep.subr.mxu0 0.0
        %2243 = vmatpush1.msra.mxu0 0.0
        %2244 = vmatprep.subr.mxu0 0.0
        %2245 = vmatpush1.msra.mxu0 0.0
        %2246 = vmatprep.subr.mxu0 0.0
        %2247 = vmatpush1.msra.mxu0 0.0
        %2248 = vmatprep.subr.mxu0 0.0
        %2249 = vmatpush1.msra.mxu0 0.0
        %2250 = vmatprep.subr.mxu0 0.0
        %2251 = vmatpush1.msra.mxu0 0.0
        %2252 = vmatprep.subr.mxu0 0.0
        %2253 = vmatpush1.msra.mxu0 0.0
        %2254 = vmatprep.subr.mxu0 0.0
        %2255 = vmatpush1.msra.mxu0 0.0
        %2256 = vmatprep.subr.mxu0 0.0
        %2257 = vmatpush1.msra.mxu0 0.0
        %2258 = vmatprep.subr.mxu0 0.0
        %2259 = vmatpush1.msra.mxu0 0.0
        %2260 = vmatprep.subr.mxu0 0.0
        %2261 = vmatpush1.msra.mxu0 0.0
        %2262 = vmatprep.subr.mxu0 0.0
        %2263 = vmatpush1.msra.mxu0 0.0
        %2264 = vmatprep.subr.mxu0 0.0
        %2265 = vmatpush1.msra.mxu0 0.0
        %2266 = vmatprep.subr.mxu0 0.0
        %2267 = vmatpush1.msra.mxu0 0.0
        %2268 = vmatprep.subr.mxu0 0.0
        %2269 = vmatpush1.msra.mxu0 0.0
        %2270 = vmatprep.subr.mxu0 0.0
        %2271 = vmatpush1.msra.mxu0 0.0
        %2272 = vmatprep.subr.mxu0 0.0
        %2273 = vmatpush1.msra.mxu0 0.0
        %2274 = vmatprep.subr.mxu0 0.0
        %2275 = vmatpush1.msra.mxu0 0.0
        %2276 = vmatprep.subr.mxu0 0.0
        %2277 = vmatpush1.msra.mxu0 0.0
        %2278 = vmatprep.subr.mxu0 0.0
        %2279 = vmatpush1.msra.mxu0 0.0
        %2280 = vmatprep.subr.mxu0 0.0
        %2281 = vmatpush1.msra.mxu0 0.0
        %2282 = vmatprep.subr.mxu0 0.0
        %2283 = vmatpush1.msra.mxu0 0.0
        %2284 = vmatprep.subr.mxu0 0.0
        %2285 = vmatpush1.msra.mxu0 0.0
        %2286 = vmatprep.mubr.f32.mxu0 0.0
        %2287 = vmatmul.mubr.f32.gmra.mrb[0].mxu0 %v2217
        %v2288 = vpop.f32.mrb[0].mxu0
        %v2289 = vadd.f32 0.0, %v2288
        %v2290 = vpop.f32.mrb[0].mxu0
        %2291 = vdwg.mxu0
        %2292 = vxpose.xlu0.b32.start [1/16] %v1636, 128
        %2293 = vxpose.xlu0.b32.cont [2/16] 0.0, 128
        %2294 = vxpose.xlu0.b32.cont [3/16] 0.0, 128
        %2295 = vxpose.xlu0.b32.cont [4/16] 0.0, 128
        %2296 = vxpose.xlu0.b32.cont [5/16] 0.0, 128
        %2297 = vxpose.xlu0.b32.cont [6/16] 0.0, 128
        %2298 = vxpose.xlu0.b32.cont [7/16] 0.0, 128
        %2299 = vxpose.xlu0.b32.cont [8/16] 0.0, 128
        %2300 = vxpose.xlu0.b32.cont [9/16] 0.0, 128
        %2301 = vxpose.xlu0.b32.cont [10/16] 0.0, 128
        %2302 = vxpose.xlu0.b32.cont [11/16] 0.0, 128
        %2303 = vxpose.xlu0.b32.cont [12/16] 0.0, 128
        %2304 = vxpose.xlu0.b32.cont [13/16] 0.0, 128
        %2305 = vxpose.xlu0.b32.cont [14/16] 0.0, 128
        %2306 = vxpose.xlu0.b32.cont [15/16] 0.0, 128
        %2307 = vxpose.xlu0.b32.end [16/16] 0.0, 128
        %v2308 = vpop.trf.xlu0
        %v2309 = vpop.trf.xlu0
        %v2310 = vpop.trf.xlu0
        %v2311 = vpop.trf.xlu0
        %v2312 = vpop.trf.xlu0
        %v2313 = vpop.trf.xlu0
        %v2314 = vpop.trf.xlu0
        %v2315 = vpop.trf.xlu0
        %v2316 = vpop.trf.xlu0
        %v2317 = vpop.trf.xlu0
        %v2318 = vpop.trf.xlu0
        %v2319 = vpop.trf.xlu0
        %v2320 = vpop.trf.xlu0
        %v2321 = vpop.trf.xlu0
        %v2322 = vpop.trf.xlu0
        %v2323 = vpop.trf.xlu0
        %v2325 = vsel %vm1890, %v2308, 0
        %v2328 = vsel %vm1894, %v1636, 0
        %2330 = vmatprep.subr.mxu0 0.0
        %2331 = vmatpush1.msra.mxu0 %v2328
        %2332 = vmatprep.subr.mxu0 0.0
        %2333 = vmatpush1.msra.mxu0 0.0
        %2334 = vmatprep.subr.mxu0 0.0
        %2335 = vmatpush1.msra.mxu0 0.0
        %2336 = vmatprep.subr.mxu0 0.0
        %2337 = vmatpush1.msra.mxu0 0.0
        %2338 = vmatprep.subr.mxu0 0.0
        %2339 = vmatpush1.msra.mxu0 0.0
        %2340 = vmatprep.subr.mxu0 0.0
        %2341 = vmatpush1.msra.mxu0 0.0
        %2342 = vmatprep.subr.mxu0 0.0
        %2343 = vmatpush1.msra.mxu0 0.0
        %2344 = vmatprep.subr.mxu0 0.0
        %2345 = vmatpush1.msra.mxu0 0.0
        %2346 = vmatprep.subr.mxu0 0.0
        %2347 = vmatpush1.msra.mxu0 0.0
        %2348 = vmatprep.subr.mxu0 0.0
        %2349 = vmatpush1.msra.mxu0 0.0
        %2350 = vmatprep.subr.mxu0 0.0
        %2351 = vmatpush1.msra.mxu0 0.0
        %2352 = vmatprep.subr.mxu0 0.0
        %2353 = vmatpush1.msra.mxu0 0.0
        %2354 = vmatprep.subr.mxu0 0.0
        %2355 = vmatpush1.msra.mxu0 0.0
        %2356 = vmatprep.subr.mxu0 0.0
        %2357 = vmatpush1.msra.mxu0 0.0
        %2358 = vmatprep.subr.mxu0 0.0
        %2359 = vmatpush1.msra.mxu0 0.0
        %2360 = vmatprep.subr.mxu0 0.0
        %2361 = vmatpush1.msra.mxu0 0.0
        %2362 = vmatprep.subr.mxu0 0.0
        %2363 = vmatpush1.msra.mxu0 0.0
        %2364 = vmatprep.subr.mxu0 0.0
        %2365 = vmatpush1.msra.mxu0 0.0
        %2366 = vmatprep.subr.mxu0 0.0
        %2367 = vmatpush1.msra.mxu0 0.0
        %2368 = vmatprep.subr.mxu0 0.0
        %2369 = vmatpush1.msra.mxu0 0.0
        %2370 = vmatprep.subr.mxu0 0.0
        %2371 = vmatpush1.msra.mxu0 0.0
        %2372 = vmatprep.subr.mxu0 0.0
        %2373 = vmatpush1.msra.mxu0 0.0
        %2374 = vmatprep.subr.mxu0 0.0
        %2375 = vmatpush1.msra.mxu0 0.0
        %2376 = vmatprep.subr.mxu0 0.0
        %2377 = vmatpush1.msra.mxu0 0.0
        %2378 = vmatprep.subr.mxu0 0.0
        %2379 = vmatpush1.msra.mxu0 0.0
        %2380 = vmatprep.subr.mxu0 0.0
        %2381 = vmatpush1.msra.mxu0 0.0
        %2382 = vmatprep.subr.mxu0 0.0
        %2383 = vmatpush1.msra.mxu0 0.0
        %2384 = vmatprep.subr.mxu0 0.0
        %2385 = vmatpush1.msra.mxu0 0.0
        %2386 = vmatprep.subr.mxu0 0.0
        %2387 = vmatpush1.msra.mxu0 0.0
        %2388 = vmatprep.subr.mxu0 0.0
        %2389 = vmatpush1.msra.mxu0 0.0
        %2390 = vmatprep.subr.mxu0 0.0
        %2391 = vmatpush1.msra.mxu0 0.0
        %2392 = vmatprep.subr.mxu0 0.0
        %2393 = vmatpush1.msra.mxu0 0.0
        %2394 = vmatprep.mubr.f32.mxu0 0.0
        %2395 = vmatmul.mubr.f32.gmra.mrb[0].mxu0 %v2325
        %v2396 = vpop.f32.mrb[0].mxu0
        %v2397 = vadd.f32 0.0, %v2396
        %v2398 = vpop.f32.mrb[0].mxu0
        %2399 = vdwg.mxu0
        %2400 = vxpose.xlu0.b32.start [1/16] %v1709, 128
        %2401 = vxpose.xlu0.b32.cont [2/16] 0.0, 128
        %2402 = vxpose.xlu0.b32.cont [3/16] 0.0, 128
        %2403 = vxpose.xlu0.b32.cont [4/16] 0.0, 128
        %2404 = vxpose.xlu0.b32.cont [5/16] 0.0, 128
        %2405 = vxpose.xlu0.b32.cont [6/16] 0.0, 128
        %2406 = vxpose.xlu0.b32.cont [7/16] 0.0, 128
        %2407 = vxpose.xlu0.b32.cont [8/16] 0.0, 128
        %2408 = vxpose.xlu0.b32.cont [9/16] 0.0, 128
        %2409 = vxpose.xlu0.b32.cont [10/16] 0.0, 128
        %2410 = vxpose.xlu0.b32.cont [11/16] 0.0, 128
        %2411 = vxpose.xlu0.b32.cont [12/16] 0.0, 128
        %2412 = vxpose.xlu0.b32.cont [13/16] 0.0, 128
        %2413 = vxpose.xlu0.b32.cont [14/16] 0.0, 128
        %2414 = vxpose.xlu0.b32.cont [15/16] 0.0, 128
        %2415 = vxpose.xlu0.b32.end [16/16] 0.0, 128
        %v2416 = vpop.trf.xlu0
        %v2417 = vpop.trf.xlu0
        %v2418 = vpop.trf.xlu0
        %v2419 = vpop.trf.xlu0
        %v2420 = vpop.trf.xlu0
        %v2421 = vpop.trf.xlu0
        %v2422 = vpop.trf.xlu0
        %v2423 = vpop.trf.xlu0
        %v2424 = vpop.trf.xlu0
        %v2425 = vpop.trf.xlu0
        %v2426 = vpop.trf.xlu0
        %v2427 = vpop.trf.xlu0
        %v2428 = vpop.trf.xlu0
        %v2429 = vpop.trf.xlu0
        %v2430 = vpop.trf.xlu0
        %v2431 = vpop.trf.xlu0
        %v2433 = vsel %vm1890, %v2416, 0
        %v2436 = vsel %vm1894, %v1709, 0
        %2438 = vmatprep.subr.mxu0 0.0
        %2439 = vmatpush1.msra.mxu0 %v2436
        %2440 = vmatprep.subr.mxu0 0.0
        %2441 = vmatpush1.msra.mxu0 0.0
        %2442 = vmatprep.subr.mxu0 0.0
        %2443 = vmatpush1.msra.mxu0 0.0
        %2444 = vmatprep.subr.mxu0 0.0
        %2445 = vmatpush1.msra.mxu0 0.0
        %2446 = vmatprep.subr.mxu0 0.0
        %2447 = vmatpush1.msra.mxu0 0.0
        %2448 = vmatprep.subr.mxu0 0.0
        %2449 = vmatpush1.msra.mxu0 0.0
        %2450 = vmatprep.subr.mxu0 0.0
        %2451 = vmatpush1.msra.mxu0 0.0
        %2452 = vmatprep.subr.mxu0 0.0
        %2453 = vmatpush1.msra.mxu0 0.0
        %2454 = vmatprep.subr.mxu0 0.0
        %2455 = vmatpush1.msra.mxu0 0.0
        %2456 = vmatprep.subr.mxu0 0.0
        %2457 = vmatpush1.msra.mxu0 0.0
        %2458 = vmatprep.subr.mxu0 0.0
        %2459 = vmatpush1.msra.mxu0 0.0
        %2460 = vmatprep.subr.mxu0 0.0
        %2461 = vmatpush1.msra.mxu0 0.0
        %2462 = vmatprep.subr.mxu0 0.0
        %2463 = vmatpush1.msra.mxu0 0.0
        %2464 = vmatprep.subr.mxu0 0.0
        %2465 = vmatpush1.msra.mxu0 0.0
        %2466 = vmatprep.subr.mxu0 0.0
        %2467 = vmatpush1.msra.mxu0 0.0
        %2468 = vmatprep.subr.mxu0 0.0
        %2469 = vmatpush1.msra.mxu0 0.0
        %2470 = vmatprep.subr.mxu0 0.0
        %2471 = vmatpush1.msra.mxu0 0.0
        %2472 = vmatprep.subr.mxu0 0.0
        %2473 = vmatpush1.msra.mxu0 0.0
        %2474 = vmatprep.subr.mxu0 0.0
        %2475 = vmatpush1.msra.mxu0 0.0
        %2476 = vmatprep.subr.mxu0 0.0
        %2477 = vmatpush1.msra.mxu0 0.0
        %2478 = vmatprep.subr.mxu0 0.0
        %2479 = vmatpush1.msra.mxu0 0.0
        %2480 = vmatprep.subr.mxu0 0.0
        %2481 = vmatpush1.msra.mxu0 0.0
        %2482 = vmatprep.subr.mxu0 0.0
        %2483 = vmatpush1.msra.mxu0 0.0
        %2484 = vmatprep.subr.mxu0 0.0
        %2485 = vmatpush1.msra.mxu0 0.0
        %2486 = vmatprep.subr.mxu0 0.0
        %2487 = vmatpush1.msra.mxu0 0.0
        %2488 = vmatprep.subr.mxu0 0.0
        %2489 = vmatpush1.msra.mxu0 0.0
        %2490 = vmatprep.subr.mxu0 0.0
        %2491 = vmatpush1.msra.mxu0 0.0
        %2492 = vmatprep.subr.mxu0 0.0
        %2493 = vmatpush1.msra.mxu0 0.0
        %2494 = vmatprep.subr.mxu0 0.0
        %2495 = vmatpush1.msra.mxu0 0.0
        %2496 = vmatprep.subr.mxu0 0.0
        %2497 = vmatpush1.msra.mxu0 0.0
        %2498 = vmatprep.subr.mxu0 0.0
        %2499 = vmatpush1.msra.mxu0 0.0
        %2500 = vmatprep.subr.mxu0 0.0
        %2501 = vmatpush1.msra.mxu0 0.0
        %2502 = vmatprep.mubr.f32.mxu0 0.0
        %2503 = vmatmul.mubr.f32.gmra.mrb[0].mxu0 %v2433
        %v2504 = vpop.f32.mrb[0].mxu0
        %v2505 = vadd.f32 0.0, %v2504
        %v2506 = vpop.f32.mrb[0].mxu0
        %2507 = vdwg.mxu0
        %2508 = vxpose.xlu0.b32.start [1/16] %v1782, 128
        %2509 = vxpose.xlu0.b32.cont [2/16] 0.0, 128
        %2510 = vxpose.xlu0.b32.cont [3/16] 0.0, 128
        %2511 = vxpose.xlu0.b32.cont [4/16] 0.0, 128
        %2512 = vxpose.xlu0.b32.cont [5/16] 0.0, 128
        %2513 = vxpose.xlu0.b32.cont [6/16] 0.0, 128
        %2514 = vxpose.xlu0.b32.cont [7/16] 0.0, 128
        %2515 = vxpose.xlu0.b32.cont [8/16] 0.0, 128
        %2516 = vxpose.xlu0.b32.cont [9/16] 0.0, 128
        %2517 = vxpose.xlu0.b32.cont [10/16] 0.0, 128
        %2518 = vxpose.xlu0.b32.cont [11/16] 0.0, 128
        %2519 = vxpose.xlu0.b32.cont [12/16] 0.0, 128
        %2520 = vxpose.xlu0.b32.cont [13/16] 0.0, 128
        %2521 = vxpose.xlu0.b32.cont [14/16] 0.0, 128
        %2522 = vxpose.xlu0.b32.cont [15/16] 0.0, 128
        %2523 = vxpose.xlu0.b32.end [16/16] 0.0, 128
        %v2524 = vpop.trf.xlu0
        %v2525 = vpop.trf.xlu0
        %v2526 = vpop.trf.xlu0
        %v2527 = vpop.trf.xlu0
        %v2528 = vpop.trf.xlu0
        %v2529 = vpop.trf.xlu0
        %v2530 = vpop.trf.xlu0
        %v2531 = vpop.trf.xlu0
        %v2532 = vpop.trf.xlu0
        %v2533 = vpop.trf.xlu0
        %v2534 = vpop.trf.xlu0
        %v2535 = vpop.trf.xlu0
        %v2536 = vpop.trf.xlu0
        %v2537 = vpop.trf.xlu0
        %v2538 = vpop.trf.xlu0
        %v2539 = vpop.trf.xlu0
        %v2541 = vsel %vm1890, %v2524, 0
        %v2544 = vsel %vm1894, %v1782, 0
        %2546 = vmatprep.subr.mxu0 0.0
        %2547 = vmatpush1.msra.mxu0 %v2544
        %2548 = vmatprep.subr.mxu0 0.0
        %2549 = vmatpush1.msra.mxu0 0.0
        %2550 = vmatprep.subr.mxu0 0.0
        %2551 = vmatpush1.msra.mxu0 0.0
        %2552 = vmatprep.subr.mxu0 0.0
        %2553 = vmatpush1.msra.mxu0 0.0
        %2554 = vmatprep.subr.mxu0 0.0
        %2555 = vmatpush1.msra.mxu0 0.0
        %2556 = vmatprep.subr.mxu0 0.0
        %2557 = vmatpush1.msra.mxu0 0.0
        %2558 = vmatprep.subr.mxu0 0.0
        %2559 = vmatpush1.msra.mxu0 0.0
        %2560 = vmatprep.subr.mxu0 0.0
        %2561 = vmatpush1.msra.mxu0 0.0
        %2562 = vmatprep.subr.mxu0 0.0
        %2563 = vmatpush1.msra.mxu0 0.0
        %2564 = vmatprep.subr.mxu0 0.0
        %2565 = vmatpush1.msra.mxu0 0.0
        %2566 = vmatprep.subr.mxu0 0.0
        %2567 = vmatpush1.msra.mxu0 0.0
        %2568 = vmatprep.subr.mxu0 0.0
        %2569 = vmatpush1.msra.mxu0 0.0
        %2570 = vmatprep.subr.mxu0 0.0
        %2571 = vmatpush1.msra.mxu0 0.0
        %2572 = vmatprep.subr.mxu0 0.0
        %2573 = vmatpush1.msra.mxu0 0.0
        %2574 = vmatprep.subr.mxu0 0.0
        %2575 = vmatpush1.msra.mxu0 0.0
        %2576 = vmatprep.subr.mxu0 0.0
        %2577 = vmatpush1.msra.mxu0 0.0
        %2578 = vmatprep.subr.mxu0 0.0
        %2579 = vmatpush1.msra.mxu0 0.0
        %2580 = vmatprep.subr.mxu0 0.0
        %2581 = vmatpush1.msra.mxu0 0.0
        %2582 = vmatprep.subr.mxu0 0.0
        %2583 = vmatpush1.msra.mxu0 0.0
        %2584 = vmatprep.subr.mxu0 0.0
        %2585 = vmatpush1.msra.mxu0 0.0
        %2586 = vmatprep.subr.mxu0 0.0
        %2587 = vmatpush1.msra.mxu0 0.0
        %2588 = vmatprep.subr.mxu0 0.0
        %2589 = vmatpush1.msra.mxu0 0.0
        %2590 = vmatprep.subr.mxu0 0.0
        %2591 = vmatpush1.msra.mxu0 0.0
        %2592 = vmatprep.subr.mxu0 0.0
        %2593 = vmatpush1.msra.mxu0 0.0
        %2594 = vmatprep.subr.mxu0 0.0
        %2595 = vmatpush1.msra.mxu0 0.0
        %2596 = vmatprep.subr.mxu0 0.0
        %2597 = vmatpush1.msra.mxu0 0.0
        %2598 = vmatprep.subr.mxu0 0.0
        %2599 = vmatpush1.msra.mxu0 0.0
        %2600 = vmatprep.subr.mxu0 0.0
        %2601 = vmatpush1.msra.mxu0 0.0
        %2602 = vmatprep.subr.mxu0 0.0
        %2603 = vmatpush1.msra.mxu0 0.0
        %2604 = vmatprep.subr.mxu0 0.0
        %2605 = vmatpush1.msra.mxu0 0.0
        %2606 = vmatprep.subr.mxu0 0.0
        %2607 = vmatpush1.msra.mxu0 0.0
        %2608 = vmatprep.subr.mxu0 0.0
        %2609 = vmatpush1.msra.mxu0 0.0
        %2610 = vmatprep.mubr.f32.mxu0 0.0
        %2611 = vmatmul.mubr.f32.gmra.mrb[0].mxu0 %v2541
        %v2612 = vpop.f32.mrb[0].mxu0
        %v2613 = vadd.f32 0.0, %v2612
        %v2614 = vpop.f32.mrb[0].mxu0
        %2615 = vdwg.mxu0
        %2616 = vxpose.xlu0.b32.start [1/16] %v1855, 128
        %2617 = vxpose.xlu0.b32.cont [2/16] 0.0, 128
        %2618 = vxpose.xlu0.b32.cont [3/16] 0.0, 128
        %2619 = vxpose.xlu0.b32.cont [4/16] 0.0, 128
        %2620 = vxpose.xlu0.b32.cont [5/16] 0.0, 128
        %2621 = vxpose.xlu0.b32.cont [6/16] 0.0, 128
        %2622 = vxpose.xlu0.b32.cont [7/16] 0.0, 128
        %2623 = vxpose.xlu0.b32.cont [8/16] 0.0, 128
        %2624 = vxpose.xlu0.b32.cont [9/16] 0.0, 128
        %2625 = vxpose.xlu0.b32.cont [10/16] 0.0, 128
        %2626 = vxpose.xlu0.b32.cont [11/16] 0.0, 128
        %2627 = vxpose.xlu0.b32.cont [12/16] 0.0, 128
        %2628 = vxpose.xlu0.b32.cont [13/16] 0.0, 128
        %2629 = vxpose.xlu0.b32.cont [14/16] 0.0, 128
        %2630 = vxpose.xlu0.b32.cont [15/16] 0.0, 128
        %2631 = vxpose.xlu0.b32.end [16/16] 0.0, 128
        %v2632 = vpop.trf.xlu0
        %v2633 = vpop.trf.xlu0
        %v2634 = vpop.trf.xlu0
        %v2635 = vpop.trf.xlu0
        %v2636 = vpop.trf.xlu0
        %v2637 = vpop.trf.xlu0
        %v2638 = vpop.trf.xlu0
        %v2639 = vpop.trf.xlu0
        %v2640 = vpop.trf.xlu0
        %v2641 = vpop.trf.xlu0
        %v2642 = vpop.trf.xlu0
        %v2643 = vpop.trf.xlu0
        %v2644 = vpop.trf.xlu0
        %v2645 = vpop.trf.xlu0
        %v2646 = vpop.trf.xlu0
        %v2647 = vpop.trf.xlu0
        %v2649 = vsel %vm1890, %v2632, 0
        %v2652 = vsel %vm1894, %v1855, 0
        %2654 = vmatprep.subr.mxu0 0.0
        %2655 = vmatpush1.msra.mxu0 %v2652
        %2656 = vmatprep.subr.mxu0 0.0
        %2657 = vmatpush1.msra.mxu0 0.0
        %2658 = vmatprep.subr.mxu0 0.0
        %2659 = vmatpush1.msra.mxu0 0.0
        %2660 = vmatprep.subr.mxu0 0.0
        %2661 = vmatpush1.msra.mxu0 0.0
        %2662 = vmatprep.subr.mxu0 0.0
        %2663 = vmatpush1.msra.mxu0 0.0
        %2664 = vmatprep.subr.mxu0 0.0
        %2665 = vmatpush1.msra.mxu0 0.0
        %2666 = vmatprep.subr.mxu0 0.0
        %2667 = vmatpush1.msra.mxu0 0.0
        %2668 = vmatprep.subr.mxu0 0.0
        %2669 = vmatpush1.msra.mxu0 0.0
        %2670 = vmatprep.subr.mxu0 0.0
        %2671 = vmatpush1.msra.mxu0 0.0
        %2672 = vmatprep.subr.mxu0 0.0
        %2673 = vmatpush1.msra.mxu0 0.0
        %2674 = vmatprep.subr.mxu0 0.0
        %2675 = vmatpush1.msra.mxu0 0.0
        %2676 = vmatprep.subr.mxu0 0.0
        %2677 = vmatpush1.msra.mxu0 0.0
        %2678 = vmatprep.subr.mxu0 0.0
        %2679 = vmatpush1.msra.mxu0 0.0
        %2680 = vmatprep.subr.mxu0 0.0
        %2681 = vmatpush1.msra.mxu0 0.0
        %2682 = vmatprep.subr.mxu0 0.0
        %2683 = vmatpush1.msra.mxu0 0.0
        %2684 = vmatprep.subr.mxu0 0.0
        %2685 = vmatpush1.msra.mxu0 0.0
        %2686 = vmatprep.subr.mxu0 0.0
        %2687 = vmatpush1.msra.mxu0 0.0
        %2688 = vmatprep.subr.mxu0 0.0
        %2689 = vmatpush1.msra.mxu0 0.0
        %2690 = vmatprep.subr.mxu0 0.0
        %2691 = vmatpush1.msra.mxu0 0.0
        %2692 = vmatprep.subr.mxu0 0.0
        %2693 = vmatpush1.msra.mxu0 0.0
        %2694 = vmatprep.subr.mxu0 0.0
        %2695 = vmatpush1.msra.mxu0 0.0
        %2696 = vmatprep.subr.mxu0 0.0
        %2697 = vmatpush1.msra.mxu0 0.0
        %2698 = vmatprep.subr.mxu0 0.0
        %2699 = vmatpush1.msra.mxu0 0.0
        %2700 = vmatprep.subr.mxu0 0.0
        %2701 = vmatpush1.msra.mxu0 0.0
        %2702 = vmatprep.subr.mxu0 0.0
        %2703 = vmatpush1.msra.mxu0 0.0
        %2704 = vmatprep.subr.mxu0 0.0
        %2705 = vmatpush1.msra.mxu0 0.0
        %2706 = vmatprep.subr.mxu0 0.0
        %2707 = vmatpush1.msra.mxu0 0.0
        %2708 = vmatprep.subr.mxu0 0.0
        %2709 = vmatpush1.msra.mxu0 0.0
        %2710 = vmatprep.subr.mxu0 0.0
        %2711 = vmatpush1.msra.mxu0 0.0
        %2712 = vmatprep.subr.mxu0 0.0
        %2713 = vmatpush1.msra.mxu0 0.0
        %2714 = vmatprep.subr.mxu0 0.0
        %2715 = vmatpush1.msra.mxu0 0.0
        %2716 = vmatprep.subr.mxu0 0.0
        %2717 = vmatpush1.msra.mxu0 0.0
        %2718 = vmatprep.mubr.f32.mxu0 0.0
        %2719 = vmatmul.mubr.f32.gmra.mrb[0].mxu0 %v2649
        %v2720 = vpop.f32.mrb[0].mxu0
        %v2721 = vadd.f32 0.0, %v2720
        %v2722 = vpop.f32.mrb[0].mxu0
        %2723 = vdwg.mxu0
        %2724 = vst [vmem:[%s268] sm:$0xf] %v1965
        %2725 = vst [vmem:[%s268 + $0x4] sm:$0xf] %v2073
        %2726 = vst [vmem:[%s268 + $0x8] sm:$0xf] %v2181
        %2727 = vst [vmem:[%s268 + $0xc] sm:$0xf] %v2289
        %2728 = vst [vmem:[%s268 + $0x10] sm:$0xf] %v2397
        %2729 = vst [vmem:[%s268 + $0x14] sm:$0xf] %v2505
        %2730 = vst [vmem:[%s268 + $0x18] sm:$0xf] %v2613
        %2731 = vst [vmem:[%s268 + $0x1c] sm:$0xf] %v2721
        %s2732 = sand.u32 %s160, 1
        %s2733 = scalar_lea.sflag [#allocation3], %s2732
        %s2734 = sand.u32 %s160, 1
        %s2735 = smul.addr %s2734, 32
        %s2736 = scalar_lea.vmem [#allocation2], %s2735
        // Predicated region
        $region41: #{tpu_custom_call.1} parent=39 // pred_check
          %p2737 = pneg %p170
        $region42: #{tpu_custom_call.1} parent=39 // pred_check_branch
          %2739 = sbr.rel (%p2737) target = $region44
        $region43: #{tpu_custom_call.1} parent=39 // pred_region
          %s2740 = smul.u32 8, %s24
          %s2742 = ssub.s32 512, 512
          %2743 = vsyncadd %s2733, %s2742
          %s2744 = smul.addr %s23, 8
          %s2745 = sadd.s32 %s2740, %s2744
          %s2746 = smul.addr %s2745, 64
          %s2747 = scalar_lea.hbm %s5, %s2746
          %s2748 = sshll.u32 %s2736, 4
          %s2749 = int_to_ptr.vmem [resolvable:$true] %s2748
          %2754 = dma.vmem_to_hbm [thread:$0]  %s2749, 512, %s2747, %s2733, 64, 64, 4
        $region44: #{tpu_custom_call.1} parent=39 // pred_fallthru
          _
      $region40: #{tpu_custom_call.1} parent=5 // pred_fallthru
        _
      %p2755 = scmp.le.s32.totalorder 2, %s14
      // Predicated region
      $region45: #{tpu_custom_call.1} parent=5 // pred_check
        %p2756 = pneg %p2755
      $region46: #{tpu_custom_call.1} parent=5 // pred_check_branch
        %2758 = sbr.rel (%p2756) target = $region48
      $region47: #{tpu_custom_call.1} parent=5 // pred_region
        %s2759 = ssub.s32 %s14, 2
        // Predicated region
        $region49: #{tpu_custom_call.1} parent=47 // pred_check
          %p2760 = pneg %p176
        $region50: #{tpu_custom_call.1} parent=47 // pred_check_branch
          %2762 = sbr.rel (%p2760) target = $region52
        $region51: #{tpu_custom_call.1} parent=47 // pred_region
          %s2763 = sand.u32 %s161, 1
          %s2764 = scalar_lea.sflag [#allocation3], %s2763
          %s2765 = sand.u32 %s161, 1
          %s2766 = smul.addr %s2765, 32
          %s2767 = scalar_lea.vmem [#allocation2], %s2766
          %2768 = dma.done %s2764, 512
        $region52: #{tpu_custom_call.1} parent=47 // pred_fallthru
          _
      $region48: #{tpu_custom_call.1} parent=5 // pred_fallthru
        _
    $region6: #{tpu_custom_call.1} parent=1 // loop_footer
      %s18 = sadd.s32 1, %s14
    $region7: #{tpu_custom_call.1} parent=1 // loop_footer_branch
      %13 = sbr.rel target = $region3
    $region8: #{tpu_custom_call.1} parent=1 // loop_exit
      _
    %2769 = vsyncpa [#allocation3], 1
    %s2770 = scalar_lea.sflag [#allocation3], 1
    %2771 = vsyncpa %s2770, 1

</llo_original>
